<compile_context>
chip_gen: v6e
topology: v6e:2x2x1
jax: 0.10.0
libtpu: 0.0.40
codegen_flags: <defaults>
</compile_context>

<pallas_src>
import functools
import math

import jax
import jax.numpy as jnp
from jax.experimental import pallas as pl
from jax.experimental.pallas import tpu as pltpu

_LANE = 1024            # lane-dense last dim (large multiple of 128)
_MAX_BLOCK_ROWS = 256   # (256, 1024) f32 block ~= 1 MiB


def _gaussian_kernel(x_ref, bits_ref, o_ref, *, mean, var, ratio):
    bits = bits_ref[...]                       # (TR, L) uint32
    h = bits.shape[0] // 2

    # uint32 -> f32 uniform via the exponent trick:
    #   f = bitcast((bits >> 9) | 0x3f800000)  is uniform in [1, 2)
    #   u_open = 2 - f   in (0, 1]  (safe for log)
    #   u_half = f - 1   in [0, 1)
    def _to_float12(b):
        return jax.lax.bitcast_convert_type(
            (b >> jnp.uint32(9)) | jnp.uint32(0x3F800000), jnp.float32)

    u1 = jnp.float32(2.0) - _to_float12(bits[:h])   # (0, 1]
    u2 = _to_float12(bits[h:]) - jnp.float32(1.0)   # [0, 1)

    # Dual-branch Box-Muller: one log/sqrt/cos/sin per *two* normal samples.
    r = jnp.sqrt(jnp.float32(-2.0) * jnp.log(u1))
    theta = jnp.float32(2.0 * math.pi) * u2
    z = jnp.concatenate([r * jnp.cos(theta), r * jnp.sin(theta)], axis=0)

    scale = jnp.float32(ratio * (var ** 2))
    o_ref[...] = x_ref[...] + scale * z + jnp.float32(mean)


def _pick_tiling(n):
    rows = -(-n // _LANE)                      # ceil(n / LANE)
    if rows <= _MAX_BLOCK_ROWS:
        tr = ((rows + 7) // 8) * 8             # single block, sublane multiple of 8
        rows_padded = tr
    else:
        tr = _MAX_BLOCK_ROWS
        rows_padded = ((rows + tr - 1) // tr) * tr
    return tr, rows_padded


def gaussian_forward(x, key, mean=0.0, var=1.0, ratio=0.05):
    """Fused  x + ratio * N(0, 1) * var**2 + mean  for any input shape."""
    orig_shape, orig_dtype = x.shape, x.dtype
    n = x.size
    tr, rows_padded = _pick_tiling(n)
    n_padded = rows_padded * _LANE

    xf = jnp.pad(jnp.ravel(x).astype(jnp.float32), (0, n_padded - n))
    x2 = xf.reshape(rows_padded, _LANE)

    bits = jax.random.bits(key, (rows_padded, _LANE), dtype=jnp.uint32)

    kernel = functools.partial(
        _gaussian_kernel, mean=float(mean), var=float(var), ratio=float(ratio))

    out2 = pl.pallas_call(
        kernel,
        out_shape=jax.ShapeDtypeStruct((rows_padded, _LANE), jnp.float32),
        grid=(rows_padded // tr,),
        in_specs=[pl.BlockSpec((tr, _LANE), lambda i: (i, 0)),
                  pl.BlockSpec((tr, _LANE), lambda i: (i, 0))],
        out_specs=pl.BlockSpec((tr, _LANE), lambda i: (i, 0)),
        compiler_params=pltpu.CompilerParams(
            dimension_semantics=("parallel",)),   # no PRNG carry -> megacore-ok
        cost_estimate=pl.CostEstimate(
            flops=10 * n_padded,
            transcendentals=2 * n_padded,
            bytes_accessed=12 * n_padded),
    )(x2, bits)

    return out2.reshape(-1)[:n].reshape(orig_shape).astype(orig_dtype)


if __name__ == "__main__":
    root = jax.random.PRNGKey(0)
    data_key, noise_key = jax.random.split(root)

    # NCHW input, consistent with the PyTorch module's typical usage.
    x = jax.random.normal(data_key, (2, 4, 16, 16), dtype=jnp.float32)

    mean, var, ratio = 0.0, 1.0, 0.05
    y = gaussian_forward(x, noise_key, mean=mean, var=var, ratio=ratio)
    jax.block_until_ready(y)

    assert y.shape == x.shape and y.dtype == x.dtype

    # Sanity: recovered noise is a small, roughly standard-normal perturbation.
    noise = (y - x - mean) / (ratio * var ** 2)
    assert float(jnp.max(jnp.abs(y - x))) < 1.0           # |0.05 * z| is small
    assert abs(float(jnp.mean(noise))) < 0.2
    assert 0.75 < float(jnp.std(noise)) < 1.25

    print("KERNEL_OK")
</pallas_src>

<mosaic_0001>
module attributes {stable_mosaic.version = 11 : i64} {
  func.func @_gaussian_kernel(%arg0: i32, %arg1: memref<8x1024xf32, #tpu.memory_space<vmem>>, %arg2: memref<8x1024xi32, #tpu.memory_space<vmem>>, %arg3: memref<8x1024xf32, #tpu.memory_space<vmem>>) attributes {dimension_semantics = [#tpu.dimension_semantics<parallel>], iteration_bounds = array<i64: 1>, scalar_prefetch = 0 : i64, scratch_operands = 0 : i64, tpu.core_type = #tpu.core_type<tc>, window_params = [{transform_indices = @transform_0, window_bounds = array<i64: 8, 1024>}, {transform_indices = @transform_1, window_bounds = array<i64: 8, 1024>}, {transform_indices = @transform_2, window_bounds = array<i64: 8, 1024>}]} {
    %c0 = arith.constant 0 : index
    %c0_0 = arith.constant 0 : index
    %0 = vector.load %arg2[%c0, %c0_0] : memref<8x1024xi32, #tpu.memory_space<vmem>>, vector<8x1024xi32>
    %1 = vector.extract_strided_slice %0 {offsets = [0, 0], sizes = [4, 1024], strides = [1, 1]} : vector<8x1024xi32> to vector<4x1024xi32>
    %c9_i32 = arith.constant 9 : i32
    %2 = vector.broadcast %c9_i32 : i32 to vector<4x1024xi32>
    %3 = arith.shrui %1, %2 : vector<4x1024xi32>
    %c1065353216_i32 = arith.constant 1065353216 : i32
    %4 = vector.broadcast %c1065353216_i32 : i32 to vector<4x1024xi32>
    %5 = arith.ori %3, %4 : vector<4x1024xi32>
    %6 = tpu.bitcast %5 : vector<4x1024xi32> -> vector<4x1024xf32>
    %cst = arith.constant 2.000000e+00 : f32
    %7 = vector.broadcast %cst : f32 to vector<4x1024xf32>
    %8 = arith.subf %7, %6 : vector<4x1024xf32>
    %9 = vector.extract_strided_slice %0 {offsets = [4, 0], sizes = [4, 1024], strides = [1, 1]} : vector<8x1024xi32> to vector<4x1024xi32>
    %c9_i32_1 = arith.constant 9 : i32
    %10 = vector.broadcast %c9_i32_1 : i32 to vector<4x1024xi32>
    %11 = arith.shrui %9, %10 : vector<4x1024xi32>
    %c1065353216_i32_2 = arith.constant 1065353216 : i32
    %12 = vector.broadcast %c1065353216_i32_2 : i32 to vector<4x1024xi32>
    %13 = arith.ori %11, %12 : vector<4x1024xi32>
    %14 = tpu.bitcast %13 : vector<4x1024xi32> -> vector<4x1024xf32>
    %cst_3 = arith.constant 1.000000e+00 : f32
    %15 = vector.broadcast %cst_3 : f32 to vector<4x1024xf32>
    %16 = arith.subf %14, %15 : vector<4x1024xf32>
    %17 = math.log %8 : vector<4x1024xf32>
    %cst_4 = arith.constant -2.000000e+00 : f32
    %18 = vector.broadcast %cst_4 : f32 to vector<4x1024xf32>
    %19 = arith.mulf %18, %17 : vector<4x1024xf32>
    %20 = math.sqrt %19 : vector<4x1024xf32>
    %cst_5 = arith.constant 6.28318548 : f32
    %21 = vector.broadcast %cst_5 : f32 to vector<4x1024xf32>
    %22 = arith.mulf %21, %16 : vector<4x1024xf32>
    %23 = math.cos %22 : vector<4x1024xf32>
    %24 = arith.mulf %20, %23 : vector<4x1024xf32>
    %25 = math.sin %22 : vector<4x1024xf32>
    %26 = arith.mulf %20, %25 : vector<4x1024xf32>
    %27 = tpu.concatenate %24, %26 in 0 : vector<4x1024xf32>, vector<4x1024xf32> -> vector<8x1024xf32>
    %c0_6 = arith.constant 0 : index
    %c0_7 = arith.constant 0 : index
    %28 = vector.load %arg1[%c0_6, %c0_7] : memref<8x1024xf32, #tpu.memory_space<vmem>>, vector<8x1024xf32>
    %cst_8 = arith.constant 5.000000e-02 : f32
    %29 = vector.broadcast %cst_8 : f32 to vector<8x1024xf32>
    %30 = arith.mulf %29, %27 : vector<8x1024xf32>
    %31 = arith.addf %28, %30 : vector<8x1024xf32>
    %cst_9 = arith.constant 0.000000e+00 : f32
    %32 = vector.broadcast %cst_9 : f32 to vector<8x1024xf32>
    %33 = arith.addf %31, %32 : vector<8x1024xf32>
    %c0_10 = arith.constant 0 : index
    %c0_11 = arith.constant 0 : index
    %34 = vector.load %arg3[%c0_10, %c0_11] : memref<8x1024xf32, #tpu.memory_space<vmem>>, vector<8x1024xf32>
    tpu.vector_store %arg3[%c0_10, %c0_11], %33 {strides = array<i32>} : memref<8x1024xf32, #tpu.memory_space<vmem>>, vector<8x1024xf32>,
    return
  }
  func.func @transform_0(%arg0: i32) -> (i32, i32) {
    %c0_i32 = arith.constant 0 : i32
    %c0_i32_0 = arith.constant 0 : i32
    return %arg0, %c0_i32 : i32, i32
  }
  func.func @transform_1(%arg0: i32) -> (i32, i32) {
    %c0_i32 = arith.constant 0 : i32
    %c0_i32_0 = arith.constant 0 : i32
    return %arg0, %c0_i32 : i32, i32
  }
  func.func @transform_2(%arg0: i32) -> (i32, i32) {
    %c0_i32 = arith.constant 0 : i32
    %c0_i32_0 = arith.constant 0 : i32
    return %arg0, %c0_i32 : i32, i32
  }
}

</mosaic_0001>

<llo_original>
// kernel: tpu_custom_call.1
$region0: #{tpu_custom_call.1}
  #allocation0 [shape = 'u32[]', space=smem, size = 0x4, offset = 0x4, fixed_abs, tag = 'smem constant byte address 0x4 - core index']
  #allocation1 [shape = 'u32[144,128]{1,0:T(1,128)}', space=vmem, size = 0x12000, scoped, tag = 'internal scratch']
  %s0 = inlined_call_operand.hbm [shape: f32[8,1024], index: 0, kind: input, shape index: {}]
  %s1 = inlined_call_operand.hbm [shape: u32[8,1024], index: 1, kind: input, shape index: {}]
  %s2 = inlined_call_operand.hbm [shape: f32[8,1024], index: 2, kind: output, shape index: {}]
  %s3 = sld [smem:[#allocation0]]
  $region26: #{tpu_custom_call.1} parent=0
    _
  %s5 = ssub.s32 1, %s3
  %s6 = scalar_select 0, %s5, %s3
  $region1: #{tpu_custom_call.1} parent=0
    #allocation2 [shape = 'u8[32768]{0}', space=vmem, size = 0x8000, scoped, tag = 'input window, operand 0, single buffered']
    #allocation3 [shape = 's32[1]{0}', space=sflag, size = 0x4, scoped, tag = 'scoped memory for tpu_custom_call.1']
    #allocation4 [shape = 's32[1]{0}', space=sflag, size = 0x4, scoped, tag = 'scoped memory for tpu_custom_call.1']
    #allocation5 [shape = 'u8[32768]{0}', space=vmem, size = 0x8000, scoped, tag = 'input window, operand 1, single buffered']
    #allocation6 [shape = 's32[1]{0}', space=sflag, size = 0x4, scoped, tag = 'scoped memory for tpu_custom_call.1']
    #allocation7 [shape = 'u8[32768]{0}', space=vmem, size = 0x8000, scoped, tag = 'output window, operand 0, single buffered']
    %7 = vsyncpa [#allocation3], 0
    %8 = vsyncpa [#allocation6], 0
    %9 = vsyncpa [#allocation4], 0
    // Predicated region
    $region2: #{tpu_custom_call.1} parent=1 // pred_check
      _
    $region3: #{tpu_custom_call.1} parent=1 // pred_check_branch
      %11 = sbr.rel (0) target = $region5
    $region4: #{tpu_custom_call.1} parent=1 // pred_region
      %s13 = ssub.s32 1024, 1024
      %14 = vsyncadd [#allocation3], %s13
      %s16 = sshll.u32 [#allocation2], 4
      %s17 = int_to_ptr.vmem [resolvable:$true] %s16
      %19 = dma.hbm_to_vmem [thread:$0]  %s0, 1024, %s17, [#allocation3]
    $region5: #{tpu_custom_call.1} parent=1 // pred_fallthru
      _
    // Predicated region
    $region6: #{tpu_custom_call.1} parent=1 // pred_check
      _
    $region7: #{tpu_custom_call.1} parent=1 // pred_check_branch
      %21 = sbr.rel (0) target = $region9
    $region8: #{tpu_custom_call.1} parent=1 // pred_region
      %s23 = ssub.s32 1024, 1024
      %24 = vsyncadd [#allocation6], %s23
      %s26 = sshll.u32 [#allocation5], 4
      %s27 = int_to_ptr.vmem [resolvable:$true] %s26
      %29 = dma.hbm_to_vmem [thread:$0]  %s1, 1024, %s27, [#allocation6]
    $region9: #{tpu_custom_call.1} parent=1 // pred_fallthru
      _
    // Predicated region
    $region10: #{tpu_custom_call.1} parent=1 // pred_check
      _
    $region11: #{tpu_custom_call.1} parent=1 // pred_check_branch
      %31 = sbr.rel (0) target = $region13
    $region12: #{tpu_custom_call.1} parent=1 // pred_region
      %32 = dma.done [#allocation3], 1024
    $region13: #{tpu_custom_call.1} parent=1 // pred_fallthru
      _
    // Predicated region
    $region14: #{tpu_custom_call.1} parent=1 // pred_check
      _
    $region15: #{tpu_custom_call.1} parent=1 // pred_check_branch
      %34 = sbr.rel (0) target = $region17
    $region16: #{tpu_custom_call.1} parent=1 // pred_region
      %35 = dma.done [#allocation6], 1024
    $region17: #{tpu_custom_call.1} parent=1 // pred_fallthru
      _
    %v36 = vld [vmem:[#allocation5] sm:$0xff]
    %v37 = vld [vmem:[#allocation5 + $0x8] sm:$0xff]
    %v38 = vld [vmem:[#allocation5 + $0x10] sm:$0xff]
    %v39 = vld [vmem:[#allocation5 + $0x18] sm:$0xff]
    %v40 = vld [vmem:[#allocation5 + $0x20] sm:$0xff]
    %v41 = vld [vmem:[#allocation5 + $0x28] sm:$0xff]
    %v42 = vld [vmem:[#allocation5 + $0x30] sm:$0xff]
    %v43 = vld [vmem:[#allocation5 + $0x38] sm:$0xff]
    %v44 = vshrl.u32 %v36, 9
    %v45 = vshrl.u32 %v37, 9
    %v46 = vshrl.u32 %v38, 9
    %v47 = vshrl.u32 %v39, 9
    %v48 = vshrl.u32 %v40, 9
    %v49 = vshrl.u32 %v41, 9
    %v50 = vshrl.u32 %v42, 9
    %v51 = vshrl.u32 %v43, 9
    %v52 = vor.u32 %v44, 1065353216
    %v53 = vor.u32 %v45, 1065353216
    %v54 = vor.u32 %v46, 1065353216
    %v55 = vor.u32 %v47, 1065353216
    %v56 = vor.u32 %v48, 1065353216
    %v57 = vor.u32 %v49, 1065353216
    %v58 = vor.u32 %v50, 1065353216
    %v59 = vor.u32 %v51, 1065353216
    %v68 = vsub.f32 2.0, %v52
    %v69 = vsub.f32 2.0, %v53
    %v70 = vsub.f32 2.0, %v54
    %v71 = vsub.f32 2.0, %v55
    %v72 = vsub.f32 2.0, %v56
    %v73 = vsub.f32 2.0, %v57
    %v74 = vsub.f32 2.0, %v58
    %v75 = vsub.f32 2.0, %v59
    %v76 = vsub.f32 %v52, 1.0
    %v77 = vsub.f32 %v53, 1.0
    %v78 = vsub.f32 %v54, 1.0
    %v79 = vsub.f32 %v55, 1.0
    %v80 = vsub.f32 %v56, 1.0
    %v81 = vsub.f32 %v57, 1.0
    %v82 = vsub.f32 %v58, 1.0
    %v83 = vsub.f32 %v59, 1.0
    %v84 = vlog2.pop %v68
    %v85 = vmul.f32 %v84, 0.6931472
    %v86 = vlog2.pop %v69
    %v87 = vmul.f32 %v86, 0.6931472
    %v88 = vlog2.pop %v70
    %v89 = vmul.f32 %v88, 0.6931472
    %v90 = vlog2.pop %v71
    %v91 = vmul.f32 %v90, 0.6931472
    %v92 = vlog2.pop %v72
    %v93 = vmul.f32 %v92, 0.6931472
    %v94 = vlog2.pop %v73
    %v95 = vmul.f32 %v94, 0.6931472
    %v96 = vlog2.pop %v74
    %v97 = vmul.f32 %v96, 0.6931472
    %v98 = vlog2.pop %v75
    %v99 = vmul.f32 %v98, 0.6931472
    %v100 = vmul.f32 %v85, -2.0
    %v101 = vmul.f32 %v87, -2.0
    %v102 = vmul.f32 %v89, -2.0
    %v103 = vmul.f32 %v91, -2.0
    %v104 = vmul.f32 %v93, -2.0
    %v105 = vmul.f32 %v95, -2.0
    %v106 = vmul.f32 %v97, -2.0
    %v107 = vmul.f32 %v99, -2.0
    %v108 = vrsqrt.pop %v100
    %v109 = vmul.f32 %v100, %v108
    %vm110 = vcmp.eq.f32.partialorder %v100, inf
    %v111 = vsel %vm110, %v100, %v109
    %vm112 = vcmp.eq.f32.partialorder %v100, 0.0
    %v113 = vand.u32 %v100, 2147483648
    %v114 = vsel %vm112, %v113, %v111
    %v115 = vrsqrt.pop %v101
    %v116 = vmul.f32 %v101, %v115
    %vm117 = vcmp.eq.f32.partialorder %v101, inf
    %v118 = vsel %vm117, %v101, %v116
    %vm119 = vcmp.eq.f32.partialorder %v101, 0.0
    %v120 = vand.u32 %v101, 2147483648
    %v121 = vsel %vm119, %v120, %v118
    %v122 = vrsqrt.pop %v102
    %v123 = vmul.f32 %v102, %v122
    %vm124 = vcmp.eq.f32.partialorder %v102, inf
    %v125 = vsel %vm124, %v102, %v123
    %vm126 = vcmp.eq.f32.partialorder %v102, 0.0
    %v127 = vand.u32 %v102, 2147483648
    %v128 = vsel %vm126, %v127, %v125
    %v129 = vrsqrt.pop %v103
    %v130 = vmul.f32 %v103, %v129
    %vm131 = vcmp.eq.f32.partialorder %v103, inf
    %v132 = vsel %vm131, %v103, %v130
    %vm133 = vcmp.eq.f32.partialorder %v103, 0.0
    %v134 = vand.u32 %v103, 2147483648
    %v135 = vsel %vm133, %v134, %v132
    %v136 = vrsqrt.pop %v104
    %v137 = vmul.f32 %v104, %v136
    %vm138 = vcmp.eq.f32.partialorder %v104, inf
    %v139 = vsel %vm138, %v104, %v137
    %vm140 = vcmp.eq.f32.partialorder %v104, 0.0
    %v141 = vand.u32 %v104, 2147483648
    %v142 = vsel %vm140, %v141, %v139
    %v143 = vrsqrt.pop %v105
    %v144 = vmul.f32 %v105, %v143
    %vm145 = vcmp.eq.f32.partialorder %v105, inf
    %v146 = vsel %vm145, %v105, %v144
    %vm147 = vcmp.eq.f32.partialorder %v105, 0.0
    %v148 = vand.u32 %v105, 2147483648
    %v149 = vsel %vm147, %v148, %v146
    %v150 = vrsqrt.pop %v106
    %v151 = vmul.f32 %v106, %v150
    %vm152 = vcmp.eq.f32.partialorder %v106, inf
    %v153 = vsel %vm152, %v106, %v151
    %vm154 = vcmp.eq.f32.partialorder %v106, 0.0
    %v155 = vand.u32 %v106, 2147483648
    %v156 = vsel %vm154, %v155, %v153
    %v157 = vrsqrt.pop %v107
    %v158 = vmul.f32 %v107, %v157
    %vm159 = vcmp.eq.f32.partialorder %v107, inf
    %v160 = vsel %vm159, %v107, %v158
    %vm161 = vcmp.eq.f32.partialorder %v107, 0.0
    %v162 = vand.u32 %v107, 2147483648
    %v163 = vsel %vm161, %v162, %v160
    %v164 = vmul.f32 %v76, 6.2831855
    %v165 = vmul.f32 %v77, 6.2831855
    %v166 = vmul.f32 %v78, 6.2831855
    %v167 = vmul.f32 %v79, 6.2831855
    %v168 = vmul.f32 %v80, 6.2831855
    %v169 = vmul.f32 %v81, 6.2831855
    %v170 = vmul.f32 %v82, 6.2831855
    %v171 = vmul.f32 %v83, 6.2831855
    %v172 = vand.u32 2147483647, %v164
    %vm173 = vcmp.le.f32.partialorder %v172, 0.7853982
    %vm174 = vcmp.lt.s32.totalorder %v164, 0
    %v175 = vand.u32 %v164, 2139095040
    %v176 = vshrl.u32 %v175, 23
    %v177 = vsub.s32 %v176, 127
    %v178 = vand.u32 2147483647, %v164
    %v179 = vand.u32 %v178, 8388607
    %v180 = vor.u32 %v179, 8388608
    %v181 = vsub.s32 0, %v180
    %v182 = vadd.s32 %v177, 1
    %vm183 = vcmp.gt.s32.totalorder %v182, 0
    %v184 = vsel %vm183, %v182, 0
    %v185 = vshrl.u32 %v184, 5
    %v186 = vand.u32 %v184, 31
    %v187 = vsub.s32 32, %v186
    %v188 = vshrl.u32 683565275, %v187
    %v189 = vshll.u32 683565275, %v186
    %v190 = vshrl.u32 2475754826, %v187
    %v191 = vor.u32 %v189, %v190
    %v192 = vshll.u32 2475754826, %v186
    %v193 = vshrl.u32 2131351028, %v187
    %v194 = vor.u32 %v192, %v193
    %v195 = vshll.u32 2131351028, %v186
    %v196 = vshrl.u32 2102212464, %v187
    %v197 = vor.u32 %v195, %v196
    %v198 = vshll.u32 2102212464, %v186
    %v199 = vshrl.u32 920167782, %v187
    %v200 = vor.u32 %v198, %v199
    %v201 = vshll.u32 920167782, %v186
    %v202 = vshrl.u32 1326507024, %v187
    %v203 = vor.u32 %v201, %v202
    %vm204 = vcmp.lt.s32.totalorder %v185, 1
    %vm205 = vcmp.lt.s32.totalorder %v185, 2
    %vm206 = vcmp.lt.s32.totalorder %v185, 3
    %vm207 = vcmp.lt.s32.totalorder %v185, 4
    %v208 = vsel %vm204, %v188, %v191
    %v209 = vsel %vm207, %v197, 2102212464
    %v210 = vsel %vm206, %v194, %v209
    %v211 = vsel %vm205, %v208, %v210
    %v212 = vsel %vm204, %v191, %v194
    %v213 = vsel %vm207, %v200, 920167782
    %v214 = vsel %vm206, %v197, %v213
    %v215 = vsel %vm205, %v212, %v214
    %v216 = vsel %vm204, %v194, %v197
    %v217 = vsel %vm207, %v203, 1326507024
    %v218 = vsel %vm206, %v200, %v217
    %v219 = vsel %vm205, %v216, %v218
    %v220 = vshll.u32 %v180, 8
    %v221 = vmul.u32.u64.compose %v220, %v219
    %v222 = vextract.low.u32 %v221
    %v223 = vextract.high.u32 %v221
    %v224 = vmul.u32.u64.compose %v220, %v215
    %v225 = vextract.low.u32 %v224
    %v226 = vextract.high.u32 %v224
    %v227 = vmul.u32 %v220, %v211
    %v228 = vadd.s32 %v223, %v225
    %vm229 = vc.u32 %v223, %v225
    %v230 = vadd.s32 %v226, 1
    %v231 = vsel %vm229, %v230, %v226
    %v232 = vadd.s32 %v227, %v231
    %v233 = vadd.s32 %v232, 536870912
    %v234 = vshrl.u32 %v233, 30
    %v235 = vshll.u32 %v234, 30
    %v236 = vsub.s32 %v232, %v235
    %vm237 = vcmp.lt.s32.totalorder %v236, 0
    %v238 = vsub.s32 0, %v236
    %v239 = vsel %vm237, %v238, %v236
    %v240 = vclz %v239
    %v241 = vsub.s32 %v240, 2
    %vm242 = vcmp.gt.s32.totalorder 0, %v241
    %v243 = vsel %vm242, 0, %v241
    %v244 = vsub.s32 32, %v243
    %v245 = vshll.u32 %v236, %v243
    %v246 = vshrl.u32 %v228, %v244
    %v247 = vor.u32 %v245, %v246
    %v248 = vsub.s32 4294967266, %v243
    %v249 = vadd.s32 %v248, 127
    %v250 = vshll.u32 %v249, 23
    %v251 = vor.u32 4788187, %v250
    %v252 = vand.u32 2147483647, %v251
    %v254 = vcvt.s32.f32 %v247
    %v255 = vmul.f32 %v254, %v252
    %v256 = vxor.u32 %v255, 2147483648
    %v257 = vsel %vm174, %v256, %v255
    %v258 = vsub.s32 4, %v234
    %v259 = vsel %vm174, %v258, %v234
    %v260 = vsel %vm173, %v164, %v257
    %v261 = vsel %vm173, 0, %v259
    %v262 = vcosq.f32.pop %v260
    %v263 = vsinq.f32.pop %v260
    %vm264 = vweird.f32 %v164
    %v265 = vand.u32 %v261, 3
    %vm266 = vcmp.lt.s32.totalorder %v265, 2
    %vm267 = vcmp.eq.s32.totalorder %v265, 0
    %v268 = vxor.u32 %v263, 2147483648
    %v269 = vsel %vm267, %v262, %v268
    %vm270 = vcmp.eq.s32.totalorder %v265, 2
    %v271 = vxor.u32 %v262, 2147483648
    %v272 = vsel %vm270, %v271, %v263
    %v273 = vsel %vm266, %v269, %v272
    %v274 = vsel %vm264, nan, %v273
    %v275 = vand.u32 2147483647, %v165
    %vm276 = vcmp.le.f32.partialorder %v275, 0.7853982
    %vm277 = vcmp.lt.s32.totalorder %v165, 0
    %v278 = vand.u32 %v165, 2139095040
    %v279 = vshrl.u32 %v278, 23
    %v280 = vsub.s32 %v279, 127
    %v281 = vand.u32 2147483647, %v165
    %v282 = vand.u32 %v281, 8388607
    %v283 = vor.u32 %v282, 8388608
    %v284 = vsub.s32 0, %v283
    %v285 = vadd.s32 %v280, 1
    %vm286 = vcmp.gt.s32.totalorder %v285, 0
    %v287 = vsel %vm286, %v285, 0
    %v288 = vshrl.u32 %v287, 5
    %v289 = vand.u32 %v287, 31
    %v290 = vsub.s32 32, %v289
    %v291 = vshrl.u32 683565275, %v290
    %v292 = vshll.u32 683565275, %v289
    %v293 = vshrl.u32 2475754826, %v290
    %v294 = vor.u32 %v292, %v293
    %v295 = vshll.u32 2475754826, %v289
    %v296 = vshrl.u32 2131351028, %v290
    %v297 = vor.u32 %v295, %v296
    %v298 = vshll.u32 2131351028, %v289
    %v299 = vshrl.u32 2102212464, %v290
    %v300 = vor.u32 %v298, %v299
    %v301 = vshll.u32 2102212464, %v289
    %v302 = vshrl.u32 920167782, %v290
    %v303 = vor.u32 %v301, %v302
    %v304 = vshll.u32 920167782, %v289
    %v305 = vshrl.u32 1326507024, %v290
    %v306 = vor.u32 %v304, %v305
    %vm307 = vcmp.lt.s32.totalorder %v288, 1
    %vm308 = vcmp.lt.s32.totalorder %v288, 2
    %vm309 = vcmp.lt.s32.totalorder %v288, 3
    %vm310 = vcmp.lt.s32.totalorder %v288, 4
    %v311 = vsel %vm307, %v291, %v294
    %v312 = vsel %vm310, %v300, 2102212464
    %v313 = vsel %vm309, %v297, %v312
    %v314 = vsel %vm308, %v311, %v313
    %v315 = vsel %vm307, %v294, %v297
    %v316 = vsel %vm310, %v303, 920167782
    %v317 = vsel %vm309, %v300, %v316
    %v318 = vsel %vm308, %v315, %v317
    %v319 = vsel %vm307, %v297, %v300
    %v320 = vsel %vm310, %v306, 1326507024
    %v321 = vsel %vm309, %v303, %v320
    %v322 = vsel %vm308, %v319, %v321
    %v323 = vshll.u32 %v283, 8
    %v324 = vmul.u32.u64.compose %v323, %v322
    %v325 = vextract.low.u32 %v324
    %v326 = vextract.high.u32 %v324
    %v327 = vmul.u32.u64.compose %v323, %v318
    %v328 = vextract.low.u32 %v327
    %v329 = vextract.high.u32 %v327
    %v330 = vmul.u32 %v323, %v314
    %v331 = vadd.s32 %v326, %v328
    %vm332 = vc.u32 %v326, %v328
    %v333 = vadd.s32 %v329, 1
    %v334 = vsel %vm332, %v333, %v329
    %v335 = vadd.s32 %v330, %v334
    %v336 = vadd.s32 %v335, 536870912
    %v337 = vshrl.u32 %v336, 30
    %v338 = vshll.u32 %v337, 30
    %v339 = vsub.s32 %v335, %v338
    %vm340 = vcmp.lt.s32.totalorder %v339, 0
    %v341 = vsub.s32 0, %v339
    %v342 = vsel %vm340, %v341, %v339
    %v343 = vclz %v342
    %v344 = vsub.s32 %v343, 2
    %vm345 = vcmp.gt.s32.totalorder 0, %v344
    %v346 = vsel %vm345, 0, %v344
    %v347 = vsub.s32 32, %v346
    %v348 = vshll.u32 %v339, %v346
    %v349 = vshrl.u32 %v331, %v347
    %v350 = vor.u32 %v348, %v349
    %v351 = vsub.s32 4294967266, %v346
    %v352 = vadd.s32 %v351, 127
    %v353 = vshll.u32 %v352, 23
    %v354 = vor.u32 4788187, %v353
    %v355 = vand.u32 2147483647, %v354
    %v357 = vcvt.s32.f32 %v350
    %v358 = vmul.f32 %v357, %v355
    %v359 = vxor.u32 %v358, 2147483648
    %v360 = vsel %vm277, %v359, %v358
    %v361 = vsub.s32 4, %v337
    %v362 = vsel %vm277, %v361, %v337
    %v363 = vsel %vm276, %v165, %v360
    %v364 = vsel %vm276, 0, %v362
    %v365 = vcosq.f32.pop %v363
    %v366 = vsinq.f32.pop %v363
    %vm367 = vweird.f32 %v165
    %v368 = vand.u32 %v364, 3
    %vm369 = vcmp.lt.s32.totalorder %v368, 2
    %vm370 = vcmp.eq.s32.totalorder %v368, 0
    %v371 = vxor.u32 %v366, 2147483648
    %v372 = vsel %vm370, %v365, %v371
    %vm373 = vcmp.eq.s32.totalorder %v368, 2
    %v374 = vxor.u32 %v365, 2147483648
    %v375 = vsel %vm373, %v374, %v366
    %v376 = vsel %vm369, %v372, %v375
    %v377 = vsel %vm367, nan, %v376
    %v378 = vand.u32 2147483647, %v166
    %vm379 = vcmp.le.f32.partialorder %v378, 0.7853982
    %vm380 = vcmp.lt.s32.totalorder %v166, 0
    %v381 = vand.u32 %v166, 2139095040
    %v382 = vshrl.u32 %v381, 23
    %v383 = vsub.s32 %v382, 127
    %v384 = vand.u32 2147483647, %v166
    %v385 = vand.u32 %v384, 8388607
    %v386 = vor.u32 %v385, 8388608
    %v387 = vsub.s32 0, %v386
    %v388 = vadd.s32 %v383, 1
    %vm389 = vcmp.gt.s32.totalorder %v388, 0
    %v390 = vsel %vm389, %v388, 0
    %v391 = vshrl.u32 %v390, 5
    %v392 = vand.u32 %v390, 31
    %v393 = vsub.s32 32, %v392
    %v394 = vshrl.u32 683565275, %v393
    %v395 = vshll.u32 683565275, %v392
    %v396 = vshrl.u32 2475754826, %v393
    %v397 = vor.u32 %v395, %v396
    %v398 = vshll.u32 2475754826, %v392
    %v399 = vshrl.u32 2131351028, %v393
    %v400 = vor.u32 %v398, %v399
    %v401 = vshll.u32 2131351028, %v392
    %v402 = vshrl.u32 2102212464, %v393
    %v403 = vor.u32 %v401, %v402
    %v404 = vshll.u32 2102212464, %v392
    %v405 = vshrl.u32 920167782, %v393
    %v406 = vor.u32 %v404, %v405
    %v407 = vshll.u32 920167782, %v392
    %v408 = vshrl.u32 1326507024, %v393
    %v409 = vor.u32 %v407, %v408
    %vm410 = vcmp.lt.s32.totalorder %v391, 1
    %vm411 = vcmp.lt.s32.totalorder %v391, 2
    %vm412 = vcmp.lt.s32.totalorder %v391, 3
    %vm413 = vcmp.lt.s32.totalorder %v391, 4
    %v414 = vsel %vm410, %v394, %v397
    %v415 = vsel %vm413, %v403, 2102212464
    %v416 = vsel %vm412, %v400, %v415
    %v417 = vsel %vm411, %v414, %v416
    %v418 = vsel %vm410, %v397, %v400
    %v419 = vsel %vm413, %v406, 920167782
    %v420 = vsel %vm412, %v403, %v419
    %v421 = vsel %vm411, %v418, %v420
    %v422 = vsel %vm410, %v400, %v403
    %v423 = vsel %vm413, %v409, 1326507024
    %v424 = vsel %vm412, %v406, %v423
    %v425 = vsel %vm411, %v422, %v424
    %v426 = vshll.u32 %v386, 8
    %v427 = vmul.u32.u64.compose %v426, %v425
    %v428 = vextract.low.u32 %v427
    %v429 = vextract.high.u32 %v427
    %v430 = vmul.u32.u64.compose %v426, %v421
    %v431 = vextract.low.u32 %v430
    %v432 = vextract.high.u32 %v430
    %v433 = vmul.u32 %v426, %v417
    %v434 = vadd.s32 %v429, %v431
    %vm435 = vc.u32 %v429, %v431
    %v436 = vadd.s32 %v432, 1
    %v437 = vsel %vm435, %v436, %v432
    %v438 = vadd.s32 %v433, %v437
    %v439 = vadd.s32 %v438, 536870912
    %v440 = vshrl.u32 %v439, 30
    %v441 = vshll.u32 %v440, 30
    %v442 = vsub.s32 %v438, %v441
    %vm443 = vcmp.lt.s32.totalorder %v442, 0
    %v444 = vsub.s32 0, %v442
    %v445 = vsel %vm443, %v444, %v442
    %v446 = vclz %v445
    %v447 = vsub.s32 %v446, 2
    %vm448 = vcmp.gt.s32.totalorder 0, %v447
    %v449 = vsel %vm448, 0, %v447
    %v450 = vsub.s32 32, %v449
    %v451 = vshll.u32 %v442, %v449
    %v452 = vshrl.u32 %v434, %v450
    %v453 = vor.u32 %v451, %v452
    %v454 = vsub.s32 4294967266, %v449
    %v455 = vadd.s32 %v454, 127
    %v456 = vshll.u32 %v455, 23
    %v457 = vor.u32 4788187, %v456
    %v458 = vand.u32 2147483647, %v457
    %v460 = vcvt.s32.f32 %v453
    %v461 = vmul.f32 %v460, %v458
    %v462 = vxor.u32 %v461, 2147483648
    %v463 = vsel %vm380, %v462, %v461
    %v464 = vsub.s32 4, %v440
    %v465 = vsel %vm380, %v464, %v440
    %v466 = vsel %vm379, %v166, %v463
    %v467 = vsel %vm379, 0, %v465
    %v468 = vcosq.f32.pop %v466
    %v469 = vsinq.f32.pop %v466
    %vm470 = vweird.f32 %v166
    %v471 = vand.u32 %v467, 3
    %vm472 = vcmp.lt.s32.totalorder %v471, 2
    %vm473 = vcmp.eq.s32.totalorder %v471, 0
    %v474 = vxor.u32 %v469, 2147483648
    %v475 = vsel %vm473, %v468, %v474
    %vm476 = vcmp.eq.s32.totalorder %v471, 2
    %v477 = vxor.u32 %v468, 2147483648
    %v478 = vsel %vm476, %v477, %v469
    %v479 = vsel %vm472, %v475, %v478
    %v480 = vsel %vm470, nan, %v479
    %v481 = vand.u32 2147483647, %v167
    %vm482 = vcmp.le.f32.partialorder %v481, 0.7853982
    %vm483 = vcmp.lt.s32.totalorder %v167, 0
    %v484 = vand.u32 %v167, 2139095040
    %v485 = vshrl.u32 %v484, 23
    %v486 = vsub.s32 %v485, 127
    %v487 = vand.u32 2147483647, %v167
    %v488 = vand.u32 %v487, 8388607
    %v489 = vor.u32 %v488, 8388608
    %v490 = vsub.s32 0, %v489
    %v491 = vadd.s32 %v486, 1
    %vm492 = vcmp.gt.s32.totalorder %v491, 0
    %v493 = vsel %vm492, %v491, 0
    %v494 = vshrl.u32 %v493, 5
    %v495 = vand.u32 %v493, 31
    %v496 = vsub.s32 32, %v495
    %v497 = vshrl.u32 683565275, %v496
    %v498 = vshll.u32 683565275, %v495
    %v499 = vshrl.u32 2475754826, %v496
    %v500 = vor.u32 %v498, %v499
    %v501 = vshll.u32 2475754826, %v495
    %v502 = vshrl.u32 2131351028, %v496
    %v503 = vor.u32 %v501, %v502
    %v504 = vshll.u32 2131351028, %v495
    %v505 = vshrl.u32 2102212464, %v496
    %v506 = vor.u32 %v504, %v505
    %v507 = vshll.u32 2102212464, %v495
    %v508 = vshrl.u32 920167782, %v496
    %v509 = vor.u32 %v507, %v508
    %v510 = vshll.u32 920167782, %v495
    %v511 = vshrl.u32 1326507024, %v496
    %v512 = vor.u32 %v510, %v511
    %vm513 = vcmp.lt.s32.totalorder %v494, 1
    %vm514 = vcmp.lt.s32.totalorder %v494, 2
    %vm515 = vcmp.lt.s32.totalorder %v494, 3
    %vm516 = vcmp.lt.s32.totalorder %v494, 4
    %v517 = vsel %vm513, %v497, %v500
    %v518 = vsel %vm516, %v506, 2102212464
    %v519 = vsel %vm515, %v503, %v518
    %v520 = vsel %vm514, %v517, %v519
    %v521 = vsel %vm513, %v500, %v503
    %v522 = vsel %vm516, %v509, 920167782
    %v523 = vsel %vm515, %v506, %v522
    %v524 = vsel %vm514, %v521, %v523
    %v525 = vsel %vm513, %v503, %v506
    %v526 = vsel %vm516, %v512, 1326507024
    %v527 = vsel %vm515, %v509, %v526
    %v528 = vsel %vm514, %v525, %v527
    %v529 = vshll.u32 %v489, 8
    %v530 = vmul.u32.u64.compose %v529, %v528
    %v531 = vextract.low.u32 %v530
    %v532 = vextract.high.u32 %v530
    %v533 = vmul.u32.u64.compose %v529, %v524
    %v534 = vextract.low.u32 %v533
    %v535 = vextract.high.u32 %v533
    %v536 = vmul.u32 %v529, %v520
    %v537 = vadd.s32 %v532, %v534
    %vm538 = vc.u32 %v532, %v534
    %v539 = vadd.s32 %v535, 1
    %v540 = vsel %vm538, %v539, %v535
    %v541 = vadd.s32 %v536, %v540
    %v542 = vadd.s32 %v541, 536870912
    %v543 = vshrl.u32 %v542, 30
    %v544 = vshll.u32 %v543, 30
    %v545 = vsub.s32 %v541, %v544
    %vm546 = vcmp.lt.s32.totalorder %v545, 0
    %v547 = vsub.s32 0, %v545
    %v548 = vsel %vm546, %v547, %v545
    %v549 = vclz %v548
    %v550 = vsub.s32 %v549, 2
    %vm551 = vcmp.gt.s32.totalorder 0, %v550
    %v552 = vsel %vm551, 0, %v550
    %v553 = vsub.s32 32, %v552
    %v554 = vshll.u32 %v545, %v552
    %v555 = vshrl.u32 %v537, %v553
    %v556 = vor.u32 %v554, %v555
    %v557 = vsub.s32 4294967266, %v552
    %v558 = vadd.s32 %v557, 127
    %v559 = vshll.u32 %v558, 23
    %v560 = vor.u32 4788187, %v559
    %v561 = vand.u32 2147483647, %v560
    %v563 = vcvt.s32.f32 %v556
    %v564 = vmul.f32 %v563, %v561
    %v565 = vxor.u32 %v564, 2147483648
    %v566 = vsel %vm483, %v565, %v564
    %v567 = vsub.s32 4, %v543
    %v568 = vsel %vm483, %v567, %v543
    %v569 = vsel %vm482, %v167, %v566
    %v570 = vsel %vm482, 0, %v568
    %v571 = vcosq.f32.pop %v569
    %v572 = vsinq.f32.pop %v569
    %vm573 = vweird.f32 %v167
    %v574 = vand.u32 %v570, 3
    %vm575 = vcmp.lt.s32.totalorder %v574, 2
    %vm576 = vcmp.eq.s32.totalorder %v574, 0
    %v577 = vxor.u32 %v572, 2147483648
    %v578 = vsel %vm576, %v571, %v577
    %vm579 = vcmp.eq.s32.totalorder %v574, 2
    %v580 = vxor.u32 %v571, 2147483648
    %v581 = vsel %vm579, %v580, %v572
    %v582 = vsel %vm575, %v578, %v581
    %v583 = vsel %vm573, nan, %v582
    %v584 = vand.u32 2147483647, %v168
    %vm585 = vcmp.le.f32.partialorder %v584, 0.7853982
    %vm586 = vcmp.lt.s32.totalorder %v168, 0
    %v587 = vand.u32 %v168, 2139095040
    %v588 = vshrl.u32 %v587, 23
    %v589 = vsub.s32 %v588, 127
    %v590 = vand.u32 2147483647, %v168
    %v591 = vand.u32 %v590, 8388607
    %v592 = vor.u32 %v591, 8388608
    %v593 = vsub.s32 0, %v592
    %v594 = vadd.s32 %v589, 1
    %vm595 = vcmp.gt.s32.totalorder %v594, 0
    %v596 = vsel %vm595, %v594, 0
    %v597 = vshrl.u32 %v596, 5
    %v598 = vand.u32 %v596, 31
    %v599 = vsub.s32 32, %v598
    %v600 = vshrl.u32 683565275, %v599
    %v601 = vshll.u32 683565275, %v598
    %v602 = vshrl.u32 2475754826, %v599
    %v603 = vor.u32 %v601, %v602
    %v604 = vshll.u32 2475754826, %v598
    %v605 = vshrl.u32 2131351028, %v599
    %v606 = vor.u32 %v604, %v605
    %v607 = vshll.u32 2131351028, %v598
    %v608 = vshrl.u32 2102212464, %v599
    %v609 = vor.u32 %v607, %v608
    %v610 = vshll.u32 2102212464, %v598
    %v611 = vshrl.u32 920167782, %v599
    %v612 = vor.u32 %v610, %v611
    %v613 = vshll.u32 920167782, %v598
    %v614 = vshrl.u32 1326507024, %v599
    %v615 = vor.u32 %v613, %v614
    %vm616 = vcmp.lt.s32.totalorder %v597, 1
    %vm617 = vcmp.lt.s32.totalorder %v597, 2
    %vm618 = vcmp.lt.s32.totalorder %v597, 3
    %vm619 = vcmp.lt.s32.totalorder %v597, 4
    %v620 = vsel %vm616, %v600, %v603
    %v621 = vsel %vm619, %v609, 2102212464
    %v622 = vsel %vm618, %v606, %v621
    %v623 = vsel %vm617, %v620, %v622
    %v624 = vsel %vm616, %v603, %v606
    %v625 = vsel %vm619, %v612, 920167782
    %v626 = vsel %vm618, %v609, %v625
    %v627 = vsel %vm617, %v624, %v626
    %v628 = vsel %vm616, %v606, %v609
    %v629 = vsel %vm619, %v615, 1326507024
    %v630 = vsel %vm618, %v612, %v629
    %v631 = vsel %vm617, %v628, %v630
    %v632 = vshll.u32 %v592, 8
    %v633 = vmul.u32.u64.compose %v632, %v631
    %v634 = vextract.low.u32 %v633
    %v635 = vextract.high.u32 %v633
    %v636 = vmul.u32.u64.compose %v632, %v627
    %v637 = vextract.low.u32 %v636
    %v638 = vextract.high.u32 %v636
    %v639 = vmul.u32 %v632, %v623
    %v640 = vadd.s32 %v635, %v637
    %vm641 = vc.u32 %v635, %v637
    %v642 = vadd.s32 %v638, 1
    %v643 = vsel %vm641, %v642, %v638
    %v644 = vadd.s32 %v639, %v643
    %v645 = vadd.s32 %v644, 536870912
    %v646 = vshrl.u32 %v645, 30
    %v647 = vshll.u32 %v646, 30
    %v648 = vsub.s32 %v644, %v647
    %vm649 = vcmp.lt.s32.totalorder %v648, 0
    %v650 = vsub.s32 0, %v648
    %v651 = vsel %vm649, %v650, %v648
    %v652 = vclz %v651
    %v653 = vsub.s32 %v652, 2
    %vm654 = vcmp.gt.s32.totalorder 0, %v653
    %v655 = vsel %vm654, 0, %v653
    %v656 = vsub.s32 32, %v655
    %v657 = vshll.u32 %v648, %v655
    %v658 = vshrl.u32 %v640, %v656
    %v659 = vor.u32 %v657, %v658
    %v660 = vsub.s32 4294967266, %v655
    %v661 = vadd.s32 %v660, 127
    %v662 = vshll.u32 %v661, 23
    %v663 = vor.u32 4788187, %v662
    %v664 = vand.u32 2147483647, %v663
    %v666 = vcvt.s32.f32 %v659
    %v667 = vmul.f32 %v666, %v664
    %v668 = vxor.u32 %v667, 2147483648
    %v669 = vsel %vm586, %v668, %v667
    %v670 = vsub.s32 4, %v646
    %v671 = vsel %vm586, %v670, %v646
    %v672 = vsel %vm585, %v168, %v669
    %v673 = vsel %vm585, 0, %v671
    %v674 = vcosq.f32.pop %v672
    %v675 = vsinq.f32.pop %v672
    %vm676 = vweird.f32 %v168
    %v677 = vand.u32 %v673, 3
    %vm678 = vcmp.lt.s32.totalorder %v677, 2
    %vm679 = vcmp.eq.s32.totalorder %v677, 0
    %v680 = vxor.u32 %v675, 2147483648
    %v681 = vsel %vm679, %v674, %v680
    %vm682 = vcmp.eq.s32.totalorder %v677, 2
    %v683 = vxor.u32 %v674, 2147483648
    %v684 = vsel %vm682, %v683, %v675
    %v685 = vsel %vm678, %v681, %v684
    %v686 = vsel %vm676, nan, %v685
    %v687 = vand.u32 2147483647, %v169
    %vm688 = vcmp.le.f32.partialorder %v687, 0.7853982
    %vm689 = vcmp.lt.s32.totalorder %v169, 0
    %v690 = vand.u32 %v169, 2139095040
    %v691 = vshrl.u32 %v690, 23
    %v692 = vsub.s32 %v691, 127
    %v693 = vand.u32 2147483647, %v169
    %v694 = vand.u32 %v693, 8388607
    %v695 = vor.u32 %v694, 8388608
    %v696 = vsub.s32 0, %v695
    %v697 = vadd.s32 %v692, 1
    %vm698 = vcmp.gt.s32.totalorder %v697, 0
    %v699 = vsel %vm698, %v697, 0
    %v700 = vshrl.u32 %v699, 5
    %v701 = vand.u32 %v699, 31
    %v702 = vsub.s32 32, %v701
    %v703 = vshrl.u32 683565275, %v702
    %v704 = vshll.u32 683565275, %v701
    %v705 = vshrl.u32 2475754826, %v702
    %v706 = vor.u32 %v704, %v705
    %v707 = vshll.u32 2475754826, %v701
    %v708 = vshrl.u32 2131351028, %v702
    %v709 = vor.u32 %v707, %v708
    %v710 = vshll.u32 2131351028, %v701
    %v711 = vshrl.u32 2102212464, %v702
    %v712 = vor.u32 %v710, %v711
    %v713 = vshll.u32 2102212464, %v701
    %v714 = vshrl.u32 920167782, %v702
    %v715 = vor.u32 %v713, %v714
    %v716 = vshll.u32 920167782, %v701
    %v717 = vshrl.u32 1326507024, %v702
    %v718 = vor.u32 %v716, %v717
    %vm719 = vcmp.lt.s32.totalorder %v700, 1
    %vm720 = vcmp.lt.s32.totalorder %v700, 2
    %vm721 = vcmp.lt.s32.totalorder %v700, 3
    %vm722 = vcmp.lt.s32.totalorder %v700, 4
    %v723 = vsel %vm719, %v703, %v706
    %v724 = vsel %vm722, %v712, 2102212464
    %v725 = vsel %vm721, %v709, %v724
    %v726 = vsel %vm720, %v723, %v725
    %v727 = vsel %vm719, %v706, %v709
    %v728 = vsel %vm722, %v715, 920167782
    %v729 = vsel %vm721, %v712, %v728
    %v730 = vsel %vm720, %v727, %v729
    %v731 = vsel %vm719, %v709, %v712
    %v732 = vsel %vm722, %v718, 1326507024
    %v733 = vsel %vm721, %v715, %v732
    %v734 = vsel %vm720, %v731, %v733
    %v735 = vshll.u32 %v695, 8
    %v736 = vmul.u32.u64.compose %v735, %v734
    %v737 = vextract.low.u32 %v736
    %v738 = vextract.high.u32 %v736
    %v739 = vmul.u32.u64.compose %v735, %v730
    %v740 = vextract.low.u32 %v739
    %v741 = vextract.high.u32 %v739
    %v742 = vmul.u32 %v735, %v726
    %v743 = vadd.s32 %v738, %v740
    %vm744 = vc.u32 %v738, %v740
    %v745 = vadd.s32 %v741, 1
    %v746 = vsel %vm744, %v745, %v741
    %v747 = vadd.s32 %v742, %v746
    %v748 = vadd.s32 %v747, 536870912
    %v749 = vshrl.u32 %v748, 30
    %v750 = vshll.u32 %v749, 30
    %v751 = vsub.s32 %v747, %v750
    %vm752 = vcmp.lt.s32.totalorder %v751, 0
    %v753 = vsub.s32 0, %v751
    %v754 = vsel %vm752, %v753, %v751
    %v755 = vclz %v754
    %v756 = vsub.s32 %v755, 2
    %vm757 = vcmp.gt.s32.totalorder 0, %v756
    %v758 = vsel %vm757, 0, %v756
    %v759 = vsub.s32 32, %v758
    %v760 = vshll.u32 %v751, %v758
    %v761 = vshrl.u32 %v743, %v759
    %v762 = vor.u32 %v760, %v761
    %v763 = vsub.s32 4294967266, %v758
    %v764 = vadd.s32 %v763, 127
    %v765 = vshll.u32 %v764, 23
    %v766 = vor.u32 4788187, %v765
    %v767 = vand.u32 2147483647, %v766
    %v769 = vcvt.s32.f32 %v762
    %v770 = vmul.f32 %v769, %v767
    %v771 = vxor.u32 %v770, 2147483648
    %v772 = vsel %vm689, %v771, %v770
    %v773 = vsub.s32 4, %v749
    %v774 = vsel %vm689, %v773, %v749
    %v775 = vsel %vm688, %v169, %v772
    %v776 = vsel %vm688, 0, %v774
    %v777 = vcosq.f32.pop %v775
    %v778 = vsinq.f32.pop %v775
    %vm779 = vweird.f32 %v169
    %v780 = vand.u32 %v776, 3
    %vm781 = vcmp.lt.s32.totalorder %v780, 2
    %vm782 = vcmp.eq.s32.totalorder %v780, 0
    %v783 = vxor.u32 %v778, 2147483648
    %v784 = vsel %vm782, %v777, %v783
    %vm785 = vcmp.eq.s32.totalorder %v780, 2
    %v786 = vxor.u32 %v777, 2147483648
    %v787 = vsel %vm785, %v786, %v778
    %v788 = vsel %vm781, %v784, %v787
    %v789 = vsel %vm779, nan, %v788
    %v790 = vand.u32 2147483647, %v170
    %vm791 = vcmp.le.f32.partialorder %v790, 0.7853982
    %vm792 = vcmp.lt.s32.totalorder %v170, 0
    %v793 = vand.u32 %v170, 2139095040
    %v794 = vshrl.u32 %v793, 23
    %v795 = vsub.s32 %v794, 127
    %v796 = vand.u32 2147483647, %v170
    %v797 = vand.u32 %v796, 8388607
    %v798 = vor.u32 %v797, 8388608
    %v799 = vsub.s32 0, %v798
    %v800 = vadd.s32 %v795, 1
    %vm801 = vcmp.gt.s32.totalorder %v800, 0
    %v802 = vsel %vm801, %v800, 0
    %v803 = vshrl.u32 %v802, 5
    %v804 = vand.u32 %v802, 31
    %v805 = vsub.s32 32, %v804
    %v806 = vshrl.u32 683565275, %v805
    %v807 = vshll.u32 683565275, %v804
    %v808 = vshrl.u32 2475754826, %v805
    %v809 = vor.u32 %v807, %v808
    %v810 = vshll.u32 2475754826, %v804
    %v811 = vshrl.u32 2131351028, %v805
    %v812 = vor.u32 %v810, %v811
    %v813 = vshll.u32 2131351028, %v804
    %v814 = vshrl.u32 2102212464, %v805
    %v815 = vor.u32 %v813, %v814
    %v816 = vshll.u32 2102212464, %v804
    %v817 = vshrl.u32 920167782, %v805
    %v818 = vor.u32 %v816, %v817
    %v819 = vshll.u32 920167782, %v804
    %v820 = vshrl.u32 1326507024, %v805
    %v821 = vor.u32 %v819, %v820
    %vm822 = vcmp.lt.s32.totalorder %v803, 1
    %vm823 = vcmp.lt.s32.totalorder %v803, 2
    %vm824 = vcmp.lt.s32.totalorder %v803, 3
    %vm825 = vcmp.lt.s32.totalorder %v803, 4
    %v826 = vsel %vm822, %v806, %v809
    %v827 = vsel %vm825, %v815, 2102212464
    %v828 = vsel %vm824, %v812, %v827
    %v829 = vsel %vm823, %v826, %v828
    %v830 = vsel %vm822, %v809, %v812
    %v831 = vsel %vm825, %v818, 920167782
    %v832 = vsel %vm824, %v815, %v831
    %v833 = vsel %vm823, %v830, %v832
    %v834 = vsel %vm822, %v812, %v815
    %v835 = vsel %vm825, %v821, 1326507024
    %v836 = vsel %vm824, %v818, %v835
    %v837 = vsel %vm823, %v834, %v836
    %v838 = vshll.u32 %v798, 8
    %v839 = vmul.u32.u64.compose %v838, %v837
    %v840 = vextract.low.u32 %v839
    %v841 = vextract.high.u32 %v839
    %v842 = vmul.u32.u64.compose %v838, %v833
    %v843 = vextract.low.u32 %v842
    %v844 = vextract.high.u32 %v842
    %v845 = vmul.u32 %v838, %v829
    %v846 = vadd.s32 %v841, %v843
    %vm847 = vc.u32 %v841, %v843
    %v848 = vadd.s32 %v844, 1
    %v849 = vsel %vm847, %v848, %v844
    %v850 = vadd.s32 %v845, %v849
    %v851 = vadd.s32 %v850, 536870912
    %v852 = vshrl.u32 %v851, 30
    %v853 = vshll.u32 %v852, 30
    %v854 = vsub.s32 %v850, %v853
    %vm855 = vcmp.lt.s32.totalorder %v854, 0
    %v856 = vsub.s32 0, %v854
    %v857 = vsel %vm855, %v856, %v854
    %v858 = vclz %v857
    %v859 = vsub.s32 %v858, 2
    %vm860 = vcmp.gt.s32.totalorder 0, %v859
    %v861 = vsel %vm860, 0, %v859
    %v862 = vsub.s32 32, %v861
    %v863 = vshll.u32 %v854, %v861
    %v864 = vshrl.u32 %v846, %v862
    %v865 = vor.u32 %v863, %v864
    %v866 = vsub.s32 4294967266, %v861
    %v867 = vadd.s32 %v866, 127
    %v868 = vshll.u32 %v867, 23
    %v869 = vor.u32 4788187, %v868
    %v870 = vand.u32 2147483647, %v869
    %v872 = vcvt.s32.f32 %v865
    %v873 = vmul.f32 %v872, %v870
    %v874 = vxor.u32 %v873, 2147483648
    %v875 = vsel %vm792, %v874, %v873
    %v876 = vsub.s32 4, %v852
    %v877 = vsel %vm792, %v876, %v852
    %v878 = vsel %vm791, %v170, %v875
    %v879 = vsel %vm791, 0, %v877
    %v880 = vcosq.f32.pop %v878
    %v881 = vsinq.f32.pop %v878
    %vm882 = vweird.f32 %v170
    %v883 = vand.u32 %v879, 3
    %vm884 = vcmp.lt.s32.totalorder %v883, 2
    %vm885 = vcmp.eq.s32.totalorder %v883, 0
    %v886 = vxor.u32 %v881, 2147483648
    %v887 = vsel %vm885, %v880, %v886
    %vm888 = vcmp.eq.s32.totalorder %v883, 2
    %v889 = vxor.u32 %v880, 2147483648
    %v890 = vsel %vm888, %v889, %v881
    %v891 = vsel %vm884, %v887, %v890
    %v892 = vsel %vm882, nan, %v891
    %v893 = vand.u32 2147483647, %v171
    %vm894 = vcmp.le.f32.partialorder %v893, 0.7853982
    %vm895 = vcmp.lt.s32.totalorder %v171, 0
    %v896 = vand.u32 %v171, 2139095040
    %v897 = vshrl.u32 %v896, 23
    %v898 = vsub.s32 %v897, 127
    %v899 = vand.u32 2147483647, %v171
    %v900 = vand.u32 %v899, 8388607
    %v901 = vor.u32 %v900, 8388608
    %v902 = vsub.s32 0, %v901
    %v903 = vadd.s32 %v898, 1
    %vm904 = vcmp.gt.s32.totalorder %v903, 0
    %v905 = vsel %vm904, %v903, 0
    %v906 = vshrl.u32 %v905, 5
    %v907 = vand.u32 %v905, 31
    %v908 = vsub.s32 32, %v907
    %v909 = vshrl.u32 683565275, %v908
    %v910 = vshll.u32 683565275, %v907
    %v911 = vshrl.u32 2475754826, %v908
    %v912 = vor.u32 %v910, %v911
    %v913 = vshll.u32 2475754826, %v907
    %v914 = vshrl.u32 2131351028, %v908
    %v915 = vor.u32 %v913, %v914
    %v916 = vshll.u32 2131351028, %v907
    %v917 = vshrl.u32 2102212464, %v908
    %v918 = vor.u32 %v916, %v917
    %v919 = vshll.u32 2102212464, %v907
    %v920 = vshrl.u32 920167782, %v908
    %v921 = vor.u32 %v919, %v920
    %v922 = vshll.u32 920167782, %v907
    %v923 = vshrl.u32 1326507024, %v908
    %v924 = vor.u32 %v922, %v923
    %vm925 = vcmp.lt.s32.totalorder %v906, 1
    %vm926 = vcmp.lt.s32.totalorder %v906, 2
    %vm927 = vcmp.lt.s32.totalorder %v906, 3
    %vm928 = vcmp.lt.s32.totalorder %v906, 4
    %v929 = vsel %vm925, %v909, %v912
    %v930 = vsel %vm928, %v918, 2102212464
    %v931 = vsel %vm927, %v915, %v930
    %v932 = vsel %vm926, %v929, %v931
    %v933 = vsel %vm925, %v912, %v915
    %v934 = vsel %vm928, %v921, 920167782
    %v935 = vsel %vm927, %v918, %v934
    %v936 = vsel %vm926, %v933, %v935
    %v937 = vsel %vm925, %v915, %v918
    %v938 = vsel %vm928, %v924, 1326507024
    %v939 = vsel %vm927, %v921, %v938
    %v940 = vsel %vm926, %v937, %v939
    %v941 = vshll.u32 %v901, 8
    %v942 = vmul.u32.u64.compose %v941, %v940
    %v943 = vextract.low.u32 %v942
    %v944 = vextract.high.u32 %v942
    %v945 = vmul.u32.u64.compose %v941, %v936
    %v946 = vextract.low.u32 %v945
    %v947 = vextract.high.u32 %v945
    %v948 = vmul.u32 %v941, %v932
    %v949 = vadd.s32 %v944, %v946
    %vm950 = vc.u32 %v944, %v946
    %v951 = vadd.s32 %v947, 1
    %v952 = vsel %vm950, %v951, %v947
    %v953 = vadd.s32 %v948, %v952
    %v954 = vadd.s32 %v953, 536870912
    %v955 = vshrl.u32 %v954, 30
    %v956 = vshll.u32 %v955, 30
    %v957 = vsub.s32 %v953, %v956
    %vm958 = vcmp.lt.s32.totalorder %v957, 0
    %v959 = vsub.s32 0, %v957
    %v960 = vsel %vm958, %v959, %v957
    %v961 = vclz %v960
    %v962 = vsub.s32 %v961, 2
    %vm963 = vcmp.gt.s32.totalorder 0, %v962
    %v964 = vsel %vm963, 0, %v962
    %v965 = vsub.s32 32, %v964
    %v966 = vshll.u32 %v957, %v964
    %v967 = vshrl.u32 %v949, %v965
    %v968 = vor.u32 %v966, %v967
    %v969 = vsub.s32 4294967266, %v964
    %v970 = vadd.s32 %v969, 127
    %v971 = vshll.u32 %v970, 23
    %v972 = vor.u32 4788187, %v971
    %v973 = vand.u32 2147483647, %v972
    %v975 = vcvt.s32.f32 %v968
    %v976 = vmul.f32 %v975, %v973
    %v977 = vxor.u32 %v976, 2147483648
    %v978 = vsel %vm895, %v977, %v976
    %v979 = vsub.s32 4, %v955
    %v980 = vsel %vm895, %v979, %v955
    %v981 = vsel %vm894, %v171, %v978
    %v982 = vsel %vm894, 0, %v980
    %v983 = vcosq.f32.pop %v981
    %v984 = vsinq.f32.pop %v981
    %vm985 = vweird.f32 %v171
    %v986 = vand.u32 %v982, 3
    %vm987 = vcmp.lt.s32.totalorder %v986, 2
    %vm988 = vcmp.eq.s32.totalorder %v986, 0
    %v989 = vxor.u32 %v984, 2147483648
    %v990 = vsel %vm988, %v983, %v989
    %vm991 = vcmp.eq.s32.totalorder %v986, 2
    %v992 = vxor.u32 %v983, 2147483648
    %v993 = vsel %vm991, %v992, %v984
    %v994 = vsel %vm987, %v990, %v993
    %v995 = vsel %vm985, nan, %v994
    %v1004 = vrot.slane %v274, 4
    %v1005 = vrot.slane %v377, 4
    %v1006 = vrot.slane %v480, 4
    %v1007 = vrot.slane %v583, 4
    %v1008 = vrot.slane %v686, 4
    %v1009 = vrot.slane %v789, 4
    %v1010 = vrot.slane %v892, 4
    %v1011 = vrot.slane %v995, 4
    %v1020 = vmul.f32 %v114, %v1004
    %v1021 = vmul.f32 %v121, %v1005
    %v1022 = vmul.f32 %v128, %v1006
    %v1023 = vmul.f32 %v135, %v1007
    %v1024 = vmul.f32 %v142, %v1008
    %v1025 = vmul.f32 %v149, %v1009
    %v1026 = vmul.f32 %v156, %v1010
    %v1027 = vmul.f32 %v163, %v1011
    %v1028 = vand.u32 2147483647, %v164
    %vm1029 = vcmp.le.f32.partialorder %v1028, 0.7853982
    %vm1030 = vcmp.lt.s32.totalorder %v164, 0
    %v1031 = vand.u32 %v164, 2139095040
    %v1032 = vshrl.u32 %v1031, 23
    %v1033 = vsub.s32 %v1032, 127
    %v1034 = vand.u32 2147483647, %v164
    %v1035 = vand.u32 %v1034, 8388607
    %v1036 = vor.u32 %v1035, 8388608
    %v1037 = vsub.s32 0, %v1036
    %v1038 = vadd.s32 %v1033, 1
    %vm1039 = vcmp.gt.s32.totalorder %v1038, 0
    %v1040 = vsel %vm1039, %v1038, 0
    %v1041 = vshrl.u32 %v1040, 5
    %v1042 = vand.u32 %v1040, 31
    %v1043 = vsub.s32 32, %v1042
    %v1044 = vshrl.u32 683565275, %v1043
    %v1045 = vshll.u32 683565275, %v1042
    %v1046 = vshrl.u32 2475754826, %v1043
    %v1047 = vor.u32 %v1045, %v1046
    %v1048 = vshll.u32 2475754826, %v1042
    %v1049 = vshrl.u32 2131351028, %v1043
    %v1050 = vor.u32 %v1048, %v1049
    %v1051 = vshll.u32 2131351028, %v1042
    %v1052 = vshrl.u32 2102212464, %v1043
    %v1053 = vor.u32 %v1051, %v1052
    %v1054 = vshll.u32 2102212464, %v1042
    %v1055 = vshrl.u32 920167782, %v1043
    %v1056 = vor.u32 %v1054, %v1055
    %v1057 = vshll.u32 920167782, %v1042
    %v1058 = vshrl.u32 1326507024, %v1043
    %v1059 = vor.u32 %v1057, %v1058
    %vm1060 = vcmp.lt.s32.totalorder %v1041, 1
    %vm1061 = vcmp.lt.s32.totalorder %v1041, 2
    %vm1062 = vcmp.lt.s32.totalorder %v1041, 3
    %vm1063 = vcmp.lt.s32.totalorder %v1041, 4
    %v1064 = vsel %vm1060, %v1044, %v1047
    %v1065 = vsel %vm1063, %v1053, 2102212464
    %v1066 = vsel %vm1062, %v1050, %v1065
    %v1067 = vsel %vm1061, %v1064, %v1066
    %v1068 = vsel %vm1060, %v1047, %v1050
    %v1069 = vsel %vm1063, %v1056, 920167782
    %v1070 = vsel %vm1062, %v1053, %v1069
    %v1071 = vsel %vm1061, %v1068, %v1070
    %v1072 = vsel %vm1060, %v1050, %v1053
    %v1073 = vsel %vm1063, %v1059, 1326507024
    %v1074 = vsel %vm1062, %v1056, %v1073
    %v1075 = vsel %vm1061, %v1072, %v1074
    %v1076 = vshll.u32 %v1036, 8
    %v1077 = vmul.u32.u64.compose %v1076, %v1075
    %v1078 = vextract.low.u32 %v1077
    %v1079 = vextract.high.u32 %v1077
    %v1080 = vmul.u32.u64.compose %v1076, %v1071
    %v1081 = vextract.low.u32 %v1080
    %v1082 = vextract.high.u32 %v1080
    %v1083 = vmul.u32 %v1076, %v1067
    %v1084 = vadd.s32 %v1079, %v1081
    %vm1085 = vc.u32 %v1079, %v1081
    %v1086 = vadd.s32 %v1082, 1
    %v1087 = vsel %vm1085, %v1086, %v1082
    %v1088 = vadd.s32 %v1083, %v1087
    %v1089 = vadd.s32 %v1088, 536870912
    %v1090 = vshrl.u32 %v1089, 30
    %v1091 = vshll.u32 %v1090, 30
    %v1092 = vsub.s32 %v1088, %v1091
    %vm1093 = vcmp.lt.s32.totalorder %v1092, 0
    %v1094 = vsub.s32 0, %v1092
    %v1095 = vsel %vm1093, %v1094, %v1092
    %v1096 = vclz %v1095
    %v1097 = vsub.s32 %v1096, 2
    %vm1098 = vcmp.gt.s32.totalorder 0, %v1097
    %v1099 = vsel %vm1098, 0, %v1097
    %v1100 = vsub.s32 32, %v1099
    %v1101 = vshll.u32 %v1092, %v1099
    %v1102 = vshrl.u32 %v1084, %v1100
    %v1103 = vor.u32 %v1101, %v1102
    %v1104 = vsub.s32 4294967266, %v1099
    %v1105 = vadd.s32 %v1104, 127
    %v1106 = vshll.u32 %v1105, 23
    %v1107 = vor.u32 4788187, %v1106
    %v1108 = vand.u32 2147483647, %v1107
    %v1110 = vcvt.s32.f32 %v1103
    %v1111 = vmul.f32 %v1110, %v1108
    %v1112 = vxor.u32 %v1111, 2147483648
    %v1113 = vsel %vm1030, %v1112, %v1111
    %v1114 = vsub.s32 4, %v1090
    %v1115 = vsel %vm1030, %v1114, %v1090
    %v1116 = vsel %vm1029, %v164, %v1113
    %v1117 = vsel %vm1029, 0, %v1115
    %v1118 = vcosq.f32.pop %v1116
    %v1119 = vsinq.f32.pop %v1116
    %vm1120 = vweird.f32 %v164
    %v1121 = vadd.s32 %v1117, 3
    %v1122 = vand.u32 %v1121, 3
    %vm1123 = vcmp.lt.s32.totalorder %v1122, 2
    %vm1124 = vcmp.eq.s32.totalorder %v1122, 0
    %v1125 = vxor.u32 %v1119, 2147483648
    %v1126 = vsel %vm1124, %v1118, %v1125
    %vm1127 = vcmp.eq.s32.totalorder %v1122, 2
    %v1128 = vxor.u32 %v1118, 2147483648
    %v1129 = vsel %vm1127, %v1128, %v1119
    %v1130 = vsel %vm1123, %v1126, %v1129
    %v1131 = vsel %vm1120, nan, %v1130
    %v1132 = vand.u32 2147483647, %v165
    %vm1133 = vcmp.le.f32.partialorder %v1132, 0.7853982
    %vm1134 = vcmp.lt.s32.totalorder %v165, 0
    %v1135 = vand.u32 %v165, 2139095040
    %v1136 = vshrl.u32 %v1135, 23
    %v1137 = vsub.s32 %v1136, 127
    %v1138 = vand.u32 2147483647, %v165
    %v1139 = vand.u32 %v1138, 8388607
    %v1140 = vor.u32 %v1139, 8388608
    %v1141 = vsub.s32 0, %v1140
    %v1142 = vadd.s32 %v1137, 1
    %vm1143 = vcmp.gt.s32.totalorder %v1142, 0
    %v1144 = vsel %vm1143, %v1142, 0
    %v1145 = vshrl.u32 %v1144, 5
    %v1146 = vand.u32 %v1144, 31
    %v1147 = vsub.s32 32, %v1146
    %v1148 = vshrl.u32 683565275, %v1147
    %v1149 = vshll.u32 683565275, %v1146
    %v1150 = vshrl.u32 2475754826, %v1147
    %v1151 = vor.u32 %v1149, %v1150
    %v1152 = vshll.u32 2475754826, %v1146
    %v1153 = vshrl.u32 2131351028, %v1147
    %v1154 = vor.u32 %v1152, %v1153
    %v1155 = vshll.u32 2131351028, %v1146
    %v1156 = vshrl.u32 2102212464, %v1147
    %v1157 = vor.u32 %v1155, %v1156
    %v1158 = vshll.u32 2102212464, %v1146
    %v1159 = vshrl.u32 920167782, %v1147
    %v1160 = vor.u32 %v1158, %v1159
    %v1161 = vshll.u32 920167782, %v1146
    %v1162 = vshrl.u32 1326507024, %v1147
    %v1163 = vor.u32 %v1161, %v1162
    %vm1164 = vcmp.lt.s32.totalorder %v1145, 1
    %vm1165 = vcmp.lt.s32.totalorder %v1145, 2
    %vm1166 = vcmp.lt.s32.totalorder %v1145, 3
    %vm1167 = vcmp.lt.s32.totalorder %v1145, 4
    %v1168 = vsel %vm1164, %v1148, %v1151
    %v1169 = vsel %vm1167, %v1157, 2102212464
    %v1170 = vsel %vm1166, %v1154, %v1169
    %v1171 = vsel %vm1165, %v1168, %v1170
    %v1172 = vsel %vm1164, %v1151, %v1154
    %v1173 = vsel %vm1167, %v1160, 920167782
    %v1174 = vsel %vm1166, %v1157, %v1173
    %v1175 = vsel %vm1165, %v1172, %v1174
    %v1176 = vsel %vm1164, %v1154, %v1157
    %v1177 = vsel %vm1167, %v1163, 1326507024
    %v1178 = vsel %vm1166, %v1160, %v1177
    %v1179 = vsel %vm1165, %v1176, %v1178
    %v1180 = vshll.u32 %v1140, 8
    %v1181 = vmul.u32.u64.compose %v1180, %v1179
    %v1182 = vextract.low.u32 %v1181
    %v1183 = vextract.high.u32 %v1181
    %v1184 = vmul.u32.u64.compose %v1180, %v1175
    %v1185 = vextract.low.u32 %v1184
    %v1186 = vextract.high.u32 %v1184
    %v1187 = vmul.u32 %v1180, %v1171
    %v1188 = vadd.s32 %v1183, %v1185
    %vm1189 = vc.u32 %v1183, %v1185
    %v1190 = vadd.s32 %v1186, 1
    %v1191 = vsel %vm1189, %v1190, %v1186
    %v1192 = vadd.s32 %v1187, %v1191
    %v1193 = vadd.s32 %v1192, 536870912
    %v1194 = vshrl.u32 %v1193, 30
    %v1195 = vshll.u32 %v1194, 30
    %v1196 = vsub.s32 %v1192, %v1195
    %vm1197 = vcmp.lt.s32.totalorder %v1196, 0
    %v1198 = vsub.s32 0, %v1196
    %v1199 = vsel %vm1197, %v1198, %v1196
    %v1200 = vclz %v1199
    %v1201 = vsub.s32 %v1200, 2
    %vm1202 = vcmp.gt.s32.totalorder 0, %v1201
    %v1203 = vsel %vm1202, 0, %v1201
    %v1204 = vsub.s32 32, %v1203
    %v1205 = vshll.u32 %v1196, %v1203
    %v1206 = vshrl.u32 %v1188, %v1204
    %v1207 = vor.u32 %v1205, %v1206
    %v1208 = vsub.s32 4294967266, %v1203
    %v1209 = vadd.s32 %v1208, 127
    %v1210 = vshll.u32 %v1209, 23
    %v1211 = vor.u32 4788187, %v1210
    %v1212 = vand.u32 2147483647, %v1211
    %v1214 = vcvt.s32.f32 %v1207
    %v1215 = vmul.f32 %v1214, %v1212
    %v1216 = vxor.u32 %v1215, 2147483648
    %v1217 = vsel %vm1134, %v1216, %v1215
    %v1218 = vsub.s32 4, %v1194
    %v1219 = vsel %vm1134, %v1218, %v1194
    %v1220 = vsel %vm1133, %v165, %v1217
    %v1221 = vsel %vm1133, 0, %v1219
    %v1222 = vcosq.f32.pop %v1220
    %v1223 = vsinq.f32.pop %v1220
    %vm1224 = vweird.f32 %v165
    %v1225 = vadd.s32 %v1221, 3
    %v1226 = vand.u32 %v1225, 3
    %vm1227 = vcmp.lt.s32.totalorder %v1226, 2
    %vm1228 = vcmp.eq.s32.totalorder %v1226, 0
    %v1229 = vxor.u32 %v1223, 2147483648
    %v1230 = vsel %vm1228, %v1222, %v1229
    %vm1231 = vcmp.eq.s32.totalorder %v1226, 2
    %v1232 = vxor.u32 %v1222, 2147483648
    %v1233 = vsel %vm1231, %v1232, %v1223
    %v1234 = vsel %vm1227, %v1230, %v1233
    %v1235 = vsel %vm1224, nan, %v1234
    %v1236 = vand.u32 2147483647, %v166
    %vm1237 = vcmp.le.f32.partialorder %v1236, 0.7853982
    %vm1238 = vcmp.lt.s32.totalorder %v166, 0
    %v1239 = vand.u32 %v166, 2139095040
    %v1240 = vshrl.u32 %v1239, 23
    %v1241 = vsub.s32 %v1240, 127
    %v1242 = vand.u32 2147483647, %v166
    %v1243 = vand.u32 %v1242, 8388607
    %v1244 = vor.u32 %v1243, 8388608
    %v1245 = vsub.s32 0, %v1244
    %v1246 = vadd.s32 %v1241, 1
    %vm1247 = vcmp.gt.s32.totalorder %v1246, 0
    %v1248 = vsel %vm1247, %v1246, 0
    %v1249 = vshrl.u32 %v1248, 5
    %v1250 = vand.u32 %v1248, 31
    %v1251 = vsub.s32 32, %v1250
    %v1252 = vshrl.u32 683565275, %v1251
    %v1253 = vshll.u32 683565275, %v1250
    %v1254 = vshrl.u32 2475754826, %v1251
    %v1255 = vor.u32 %v1253, %v1254
    %v1256 = vshll.u32 2475754826, %v1250
    %v1257 = vshrl.u32 2131351028, %v1251
    %v1258 = vor.u32 %v1256, %v1257
    %v1259 = vshll.u32 2131351028, %v1250
    %v1260 = vshrl.u32 2102212464, %v1251
    %v1261 = vor.u32 %v1259, %v1260
    %v1262 = vshll.u32 2102212464, %v1250
    %v1263 = vshrl.u32 920167782, %v1251
    %v1264 = vor.u32 %v1262, %v1263
    %v1265 = vshll.u32 920167782, %v1250
    %v1266 = vshrl.u32 1326507024, %v1251
    %v1267 = vor.u32 %v1265, %v1266
    %vm1268 = vcmp.lt.s32.totalorder %v1249, 1
    %vm1269 = vcmp.lt.s32.totalorder %v1249, 2
    %vm1270 = vcmp.lt.s32.totalorder %v1249, 3
    %vm1271 = vcmp.lt.s32.totalorder %v1249, 4
    %v1272 = vsel %vm1268, %v1252, %v1255
    %v1273 = vsel %vm1271, %v1261, 2102212464
    %v1274 = vsel %vm1270, %v1258, %v1273
    %v1275 = vsel %vm1269, %v1272, %v1274
    %v1276 = vsel %vm1268, %v1255, %v1258
    %v1277 = vsel %vm1271, %v1264, 920167782
    %v1278 = vsel %vm1270, %v1261, %v1277
    %v1279 = vsel %vm1269, %v1276, %v1278
    %v1280 = vsel %vm1268, %v1258, %v1261
    %v1281 = vsel %vm1271, %v1267, 1326507024
    %v1282 = vsel %vm1270, %v1264, %v1281
    %v1283 = vsel %vm1269, %v1280, %v1282
    %v1284 = vshll.u32 %v1244, 8
    %v1285 = vmul.u32.u64.compose %v1284, %v1283
    %v1286 = vextract.low.u32 %v1285
    %v1287 = vextract.high.u32 %v1285
    %v1288 = vmul.u32.u64.compose %v1284, %v1279
    %v1289 = vextract.low.u32 %v1288
    %v1290 = vextract.high.u32 %v1288
    %v1291 = vmul.u32 %v1284, %v1275
    %v1292 = vadd.s32 %v1287, %v1289
    %vm1293 = vc.u32 %v1287, %v1289
    %v1294 = vadd.s32 %v1290, 1
    %v1295 = vsel %vm1293, %v1294, %v1290
    %v1296 = vadd.s32 %v1291, %v1295
    %v1297 = vadd.s32 %v1296, 536870912
    %v1298 = vshrl.u32 %v1297, 30
    %v1299 = vshll.u32 %v1298, 30
    %v1300 = vsub.s32 %v1296, %v1299
    %vm1301 = vcmp.lt.s32.totalorder %v1300, 0
    %v1302 = vsub.s32 0, %v1300
    %v1303 = vsel %vm1301, %v1302, %v1300
    %v1304 = vclz %v1303
    %v1305 = vsub.s32 %v1304, 2
    %vm1306 = vcmp.gt.s32.totalorder 0, %v1305
    %v1307 = vsel %vm1306, 0, %v1305
    %v1308 = vsub.s32 32, %v1307
    %v1309 = vshll.u32 %v1300, %v1307
    %v1310 = vshrl.u32 %v1292, %v1308
    %v1311 = vor.u32 %v1309, %v1310
    %v1312 = vsub.s32 4294967266, %v1307
    %v1313 = vadd.s32 %v1312, 127
    %v1314 = vshll.u32 %v1313, 23
    %v1315 = vor.u32 4788187, %v1314
    %v1316 = vand.u32 2147483647, %v1315
    %v1318 = vcvt.s32.f32 %v1311
    %v1319 = vmul.f32 %v1318, %v1316
    %v1320 = vxor.u32 %v1319, 2147483648
    %v1321 = vsel %vm1238, %v1320, %v1319
    %v1322 = vsub.s32 4, %v1298
    %v1323 = vsel %vm1238, %v1322, %v1298
    %v1324 = vsel %vm1237, %v166, %v1321
    %v1325 = vsel %vm1237, 0, %v1323
    %v1326 = vcosq.f32.pop %v1324
    %v1327 = vsinq.f32.pop %v1324
    %vm1328 = vweird.f32 %v166
    %v1329 = vadd.s32 %v1325, 3
    %v1330 = vand.u32 %v1329, 3
    %vm1331 = vcmp.lt.s32.totalorder %v1330, 2
    %vm1332 = vcmp.eq.s32.totalorder %v1330, 0
    %v1333 = vxor.u32 %v1327, 2147483648
    %v1334 = vsel %vm1332, %v1326, %v1333
    %vm1335 = vcmp.eq.s32.totalorder %v1330, 2
    %v1336 = vxor.u32 %v1326, 2147483648
    %v1337 = vsel %vm1335, %v1336, %v1327
    %v1338 = vsel %vm1331, %v1334, %v1337
    %v1339 = vsel %vm1328, nan, %v1338
    %v1340 = vand.u32 2147483647, %v167
    %vm1341 = vcmp.le.f32.partialorder %v1340, 0.7853982
    %vm1342 = vcmp.lt.s32.totalorder %v167, 0
    %v1343 = vand.u32 %v167, 2139095040
    %v1344 = vshrl.u32 %v1343, 23
    %v1345 = vsub.s32 %v1344, 127
    %v1346 = vand.u32 2147483647, %v167
    %v1347 = vand.u32 %v1346, 8388607
    %v1348 = vor.u32 %v1347, 8388608
    %v1349 = vsub.s32 0, %v1348
    %v1350 = vadd.s32 %v1345, 1
    %vm1351 = vcmp.gt.s32.totalorder %v1350, 0
    %v1352 = vsel %vm1351, %v1350, 0
    %v1353 = vshrl.u32 %v1352, 5
    %v1354 = vand.u32 %v1352, 31
    %v1355 = vsub.s32 32, %v1354
    %v1356 = vshrl.u32 683565275, %v1355
    %v1357 = vshll.u32 683565275, %v1354
    %v1358 = vshrl.u32 2475754826, %v1355
    %v1359 = vor.u32 %v1357, %v1358
    %v1360 = vshll.u32 2475754826, %v1354
    %v1361 = vshrl.u32 2131351028, %v1355
    %v1362 = vor.u32 %v1360, %v1361
    %v1363 = vshll.u32 2131351028, %v1354
    %v1364 = vshrl.u32 2102212464, %v1355
    %v1365 = vor.u32 %v1363, %v1364
    %v1366 = vshll.u32 2102212464, %v1354
    %v1367 = vshrl.u32 920167782, %v1355
    %v1368 = vor.u32 %v1366, %v1367
    %v1369 = vshll.u32 920167782, %v1354
    %v1370 = vshrl.u32 1326507024, %v1355
    %v1371 = vor.u32 %v1369, %v1370
    %vm1372 = vcmp.lt.s32.totalorder %v1353, 1
    %vm1373 = vcmp.lt.s32.totalorder %v1353, 2
    %vm1374 = vcmp.lt.s32.totalorder %v1353, 3
    %vm1375 = vcmp.lt.s32.totalorder %v1353, 4
    %v1376 = vsel %vm1372, %v1356, %v1359
    %v1377 = vsel %vm1375, %v1365, 2102212464
    %v1378 = vsel %vm1374, %v1362, %v1377
    %v1379 = vsel %vm1373, %v1376, %v1378
    %v1380 = vsel %vm1372, %v1359, %v1362
    %v1381 = vsel %vm1375, %v1368, 920167782
    %v1382 = vsel %vm1374, %v1365, %v1381
    %v1383 = vsel %vm1373, %v1380, %v1382
    %v1384 = vsel %vm1372, %v1362, %v1365
    %v1385 = vsel %vm1375, %v1371, 1326507024
    %v1386 = vsel %vm1374, %v1368, %v1385
    %v1387 = vsel %vm1373, %v1384, %v1386
    %v1388 = vshll.u32 %v1348, 8
    %v1389 = vmul.u32.u64.compose %v1388, %v1387
    %v1390 = vextract.low.u32 %v1389
    %v1391 = vextract.high.u32 %v1389
    %v1392 = vmul.u32.u64.compose %v1388, %v1383
    %v1393 = vextract.low.u32 %v1392
    %v1394 = vextract.high.u32 %v1392
    %v1395 = vmul.u32 %v1388, %v1379
    %v1396 = vadd.s32 %v1391, %v1393
    %vm1397 = vc.u32 %v1391, %v1393
    %v1398 = vadd.s32 %v1394, 1
    %v1399 = vsel %vm1397, %v1398, %v1394
    %v1400 = vadd.s32 %v1395, %v1399
    %v1401 = vadd.s32 %v1400, 536870912
    %v1402 = vshrl.u32 %v1401, 30
    %v1403 = vshll.u32 %v1402, 30
    %v1404 = vsub.s32 %v1400, %v1403
    %vm1405 = vcmp.lt.s32.totalorder %v1404, 0
    %v1406 = vsub.s32 0, %v1404
    %v1407 = vsel %vm1405, %v1406, %v1404
    %v1408 = vclz %v1407
    %v1409 = vsub.s32 %v1408, 2
    %vm1410 = vcmp.gt.s32.totalorder 0, %v1409
    %v1411 = vsel %vm1410, 0, %v1409
    %v1412 = vsub.s32 32, %v1411
    %v1413 = vshll.u32 %v1404, %v1411
    %v1414 = vshrl.u32 %v1396, %v1412
    %v1415 = vor.u32 %v1413, %v1414
    %v1416 = vsub.s32 4294967266, %v1411
    %v1417 = vadd.s32 %v1416, 127
    %v1418 = vshll.u32 %v1417, 23
    %v1419 = vor.u32 4788187, %v1418
    %v1420 = vand.u32 2147483647, %v1419
    %v1422 = vcvt.s32.f32 %v1415
    %v1423 = vmul.f32 %v1422, %v1420
    %v1424 = vxor.u32 %v1423, 2147483648
    %v1425 = vsel %vm1342, %v1424, %v1423
    %v1426 = vsub.s32 4, %v1402
    %v1427 = vsel %vm1342, %v1426, %v1402
    %v1428 = vsel %vm1341, %v167, %v1425
    %v1429 = vsel %vm1341, 0, %v1427
    %v1430 = vcosq.f32.pop %v1428
    %v1431 = vsinq.f32.pop %v1428
    %vm1432 = vweird.f32 %v167
    %v1433 = vadd.s32 %v1429, 3
    %v1434 = vand.u32 %v1433, 3
    %vm1435 = vcmp.lt.s32.totalorder %v1434, 2
    %vm1436 = vcmp.eq.s32.totalorder %v1434, 0
    %v1437 = vxor.u32 %v1431, 2147483648
    %v1438 = vsel %vm1436, %v1430, %v1437
    %vm1439 = vcmp.eq.s32.totalorder %v1434, 2
    %v1440 = vxor.u32 %v1430, 2147483648
    %v1441 = vsel %vm1439, %v1440, %v1431
    %v1442 = vsel %vm1435, %v1438, %v1441
    %v1443 = vsel %vm1432, nan, %v1442
    %v1444 = vand.u32 2147483647, %v168
    %vm1445 = vcmp.le.f32.partialorder %v1444, 0.7853982
    %vm1446 = vcmp.lt.s32.totalorder %v168, 0
    %v1447 = vand.u32 %v168, 2139095040
    %v1448 = vshrl.u32 %v1447, 23
    %v1449 = vsub.s32 %v1448, 127
    %v1450 = vand.u32 2147483647, %v168
    %v1451 = vand.u32 %v1450, 8388607
    %v1452 = vor.u32 %v1451, 8388608
    %v1453 = vsub.s32 0, %v1452
    %v1454 = vadd.s32 %v1449, 1
    %vm1455 = vcmp.gt.s32.totalorder %v1454, 0
    %v1456 = vsel %vm1455, %v1454, 0
    %v1457 = vshrl.u32 %v1456, 5
    %v1458 = vand.u32 %v1456, 31
    %v1459 = vsub.s32 32, %v1458
    %v1460 = vshrl.u32 683565275, %v1459
    %v1461 = vshll.u32 683565275, %v1458
    %v1462 = vshrl.u32 2475754826, %v1459
    %v1463 = vor.u32 %v1461, %v1462
    %v1464 = vshll.u32 2475754826, %v1458
    %v1465 = vshrl.u32 2131351028, %v1459
    %v1466 = vor.u32 %v1464, %v1465
    %v1467 = vshll.u32 2131351028, %v1458
    %v1468 = vshrl.u32 2102212464, %v1459
    %v1469 = vor.u32 %v1467, %v1468
    %v1470 = vshll.u32 2102212464, %v1458
    %v1471 = vshrl.u32 920167782, %v1459
    %v1472 = vor.u32 %v1470, %v1471
    %v1473 = vshll.u32 920167782, %v1458
    %v1474 = vshrl.u32 1326507024, %v1459
    %v1475 = vor.u32 %v1473, %v1474
    %vm1476 = vcmp.lt.s32.totalorder %v1457, 1
    %vm1477 = vcmp.lt.s32.totalorder %v1457, 2
    %vm1478 = vcmp.lt.s32.totalorder %v1457, 3
    %vm1479 = vcmp.lt.s32.totalorder %v1457, 4
    %v1480 = vsel %vm1476, %v1460, %v1463
    %v1481 = vsel %vm1479, %v1469, 2102212464
    %v1482 = vsel %vm1478, %v1466, %v1481
    %v1483 = vsel %vm1477, %v1480, %v1482
    %v1484 = vsel %vm1476, %v1463, %v1466
    %v1485 = vsel %vm1479, %v1472, 920167782
    %v1486 = vsel %vm1478, %v1469, %v1485
    %v1487 = vsel %vm1477, %v1484, %v1486
    %v1488 = vsel %vm1476, %v1466, %v1469
    %v1489 = vsel %vm1479, %v1475, 1326507024
    %v1490 = vsel %vm1478, %v1472, %v1489
    %v1491 = vsel %vm1477, %v1488, %v1490
    %v1492 = vshll.u32 %v1452, 8
    %v1493 = vmul.u32.u64.compose %v1492, %v1491
    %v1494 = vextract.low.u32 %v1493
    %v1495 = vextract.high.u32 %v1493
    %v1496 = vmul.u32.u64.compose %v1492, %v1487
    %v1497 = vextract.low.u32 %v1496
    %v1498 = vextract.high.u32 %v1496
    %v1499 = vmul.u32 %v1492, %v1483
    %v1500 = vadd.s32 %v1495, %v1497
    %vm1501 = vc.u32 %v1495, %v1497
    %v1502 = vadd.s32 %v1498, 1
    %v1503 = vsel %vm1501, %v1502, %v1498
    %v1504 = vadd.s32 %v1499, %v1503
    %v1505 = vadd.s32 %v1504, 536870912
    %v1506 = vshrl.u32 %v1505, 30
    %v1507 = vshll.u32 %v1506, 30
    %v1508 = vsub.s32 %v1504, %v1507
    %vm1509 = vcmp.lt.s32.totalorder %v1508, 0
    %v1510 = vsub.s32 0, %v1508
    %v1511 = vsel %vm1509, %v1510, %v1508
    %v1512 = vclz %v1511
    %v1513 = vsub.s32 %v1512, 2
    %vm1514 = vcmp.gt.s32.totalorder 0, %v1513
    %v1515 = vsel %vm1514, 0, %v1513
    %v1516 = vsub.s32 32, %v1515
    %v1517 = vshll.u32 %v1508, %v1515
    %v1518 = vshrl.u32 %v1500, %v1516
    %v1519 = vor.u32 %v1517, %v1518
    %v1520 = vsub.s32 4294967266, %v1515
    %v1521 = vadd.s32 %v1520, 127
    %v1522 = vshll.u32 %v1521, 23
    %v1523 = vor.u32 4788187, %v1522
    %v1524 = vand.u32 2147483647, %v1523
    %v1526 = vcvt.s32.f32 %v1519
    %v1527 = vmul.f32 %v1526, %v1524
    %v1528 = vxor.u32 %v1527, 2147483648
    %v1529 = vsel %vm1446, %v1528, %v1527
    %v1530 = vsub.s32 4, %v1506
    %v1531 = vsel %vm1446, %v1530, %v1506
    %v1532 = vsel %vm1445, %v168, %v1529
    %v1533 = vsel %vm1445, 0, %v1531
    %v1534 = vcosq.f32.pop %v1532
    %v1535 = vsinq.f32.pop %v1532
    %vm1536 = vweird.f32 %v168
    %v1537 = vadd.s32 %v1533, 3
    %v1538 = vand.u32 %v1537, 3
    %vm1539 = vcmp.lt.s32.totalorder %v1538, 2
    %vm1540 = vcmp.eq.s32.totalorder %v1538, 0
    %v1541 = vxor.u32 %v1535, 2147483648
    %v1542 = vsel %vm1540, %v1534, %v1541
    %vm1543 = vcmp.eq.s32.totalorder %v1538, 2
    %v1544 = vxor.u32 %v1534, 2147483648
    %v1545 = vsel %vm1543, %v1544, %v1535
    %v1546 = vsel %vm1539, %v1542, %v1545
    %v1547 = vsel %vm1536, nan, %v1546
    %v1548 = vand.u32 2147483647, %v169
    %vm1549 = vcmp.le.f32.partialorder %v1548, 0.7853982
    %vm1550 = vcmp.lt.s32.totalorder %v169, 0
    %v1551 = vand.u32 %v169, 2139095040
    %v1552 = vshrl.u32 %v1551, 23
    %v1553 = vsub.s32 %v1552, 127
    %v1554 = vand.u32 2147483647, %v169
    %v1555 = vand.u32 %v1554, 8388607
    %v1556 = vor.u32 %v1555, 8388608
    %v1557 = vsub.s32 0, %v1556
    %v1558 = vadd.s32 %v1553, 1
    %vm1559 = vcmp.gt.s32.totalorder %v1558, 0
    %v1560 = vsel %vm1559, %v1558, 0
    %v1561 = vshrl.u32 %v1560, 5
    %v1562 = vand.u32 %v1560, 31
    %v1563 = vsub.s32 32, %v1562
    %v1564 = vshrl.u32 683565275, %v1563
    %v1565 = vshll.u32 683565275, %v1562
    %v1566 = vshrl.u32 2475754826, %v1563
    %v1567 = vor.u32 %v1565, %v1566
    %v1568 = vshll.u32 2475754826, %v1562
    %v1569 = vshrl.u32 2131351028, %v1563
    %v1570 = vor.u32 %v1568, %v1569
    %v1571 = vshll.u32 2131351028, %v1562
    %v1572 = vshrl.u32 2102212464, %v1563
    %v1573 = vor.u32 %v1571, %v1572
    %v1574 = vshll.u32 2102212464, %v1562
    %v1575 = vshrl.u32 920167782, %v1563
    %v1576 = vor.u32 %v1574, %v1575
    %v1577 = vshll.u32 920167782, %v1562
    %v1578 = vshrl.u32 1326507024, %v1563
    %v1579 = vor.u32 %v1577, %v1578
    %vm1580 = vcmp.lt.s32.totalorder %v1561, 1
    %vm1581 = vcmp.lt.s32.totalorder %v1561, 2
    %vm1582 = vcmp.lt.s32.totalorder %v1561, 3
    %vm1583 = vcmp.lt.s32.totalorder %v1561, 4
    %v1584 = vsel %vm1580, %v1564, %v1567
    %v1585 = vsel %vm1583, %v1573, 2102212464
    %v1586 = vsel %vm1582, %v1570, %v1585
    %v1587 = vsel %vm1581, %v1584, %v1586
    %v1588 = vsel %vm1580, %v1567, %v1570
    %v1589 = vsel %vm1583, %v1576, 920167782
    %v1590 = vsel %vm1582, %v1573, %v1589
    %v1591 = vsel %vm1581, %v1588, %v1590
    %v1592 = vsel %vm1580, %v1570, %v1573
    %v1593 = vsel %vm1583, %v1579, 1326507024
    %v1594 = vsel %vm1582, %v1576, %v1593
    %v1595 = vsel %vm1581, %v1592, %v1594
    %v1596 = vshll.u32 %v1556, 8
    %v1597 = vmul.u32.u64.compose %v1596, %v1595
    %v1598 = vextract.low.u32 %v1597
    %v1599 = vextract.high.u32 %v1597
    %v1600 = vmul.u32.u64.compose %v1596, %v1591
    %v1601 = vextract.low.u32 %v1600
    %v1602 = vextract.high.u32 %v1600
    %v1603 = vmul.u32 %v1596, %v1587
    %v1604 = vadd.s32 %v1599, %v1601
    %vm1605 = vc.u32 %v1599, %v1601
    %v1606 = vadd.s32 %v1602, 1
    %v1607 = vsel %vm1605, %v1606, %v1602
    %v1608 = vadd.s32 %v1603, %v1607
    %v1609 = vadd.s32 %v1608, 536870912
    %v1610 = vshrl.u32 %v1609, 30
    %v1611 = vshll.u32 %v1610, 30
    %v1612 = vsub.s32 %v1608, %v1611
    %vm1613 = vcmp.lt.s32.totalorder %v1612, 0
    %v1614 = vsub.s32 0, %v1612
    %v1615 = vsel %vm1613, %v1614, %v1612
    %v1616 = vclz %v1615
    %v1617 = vsub.s32 %v1616, 2
    %vm1618 = vcmp.gt.s32.totalorder 0, %v1617
    %v1619 = vsel %vm1618, 0, %v1617
    %v1620 = vsub.s32 32, %v1619
    %v1621 = vshll.u32 %v1612, %v1619
    %v1622 = vshrl.u32 %v1604, %v1620
    %v1623 = vor.u32 %v1621, %v1622
    %v1624 = vsub.s32 4294967266, %v1619
    %v1625 = vadd.s32 %v1624, 127
    %v1626 = vshll.u32 %v1625, 23
    %v1627 = vor.u32 4788187, %v1626
    %v1628 = vand.u32 2147483647, %v1627
    %v1630 = vcvt.s32.f32 %v1623
    %v1631 = vmul.f32 %v1630, %v1628
    %v1632 = vxor.u32 %v1631, 2147483648
    %v1633 = vsel %vm1550, %v1632, %v1631
    %v1634 = vsub.s32 4, %v1610
    %v1635 = vsel %vm1550, %v1634, %v1610
    %v1636 = vsel %vm1549, %v169, %v1633
    %v1637 = vsel %vm1549, 0, %v1635
    %v1638 = vcosq.f32.pop %v1636
    %v1639 = vsinq.f32.pop %v1636
    %vm1640 = vweird.f32 %v169
    %v1641 = vadd.s32 %v1637, 3
    %v1642 = vand.u32 %v1641, 3
    %vm1643 = vcmp.lt.s32.totalorder %v1642, 2
    %vm1644 = vcmp.eq.s32.totalorder %v1642, 0
    %v1645 = vxor.u32 %v1639, 2147483648
    %v1646 = vsel %vm1644, %v1638, %v1645
    %vm1647 = vcmp.eq.s32.totalorder %v1642, 2
    %v1648 = vxor.u32 %v1638, 2147483648
    %v1649 = vsel %vm1647, %v1648, %v1639
    %v1650 = vsel %vm1643, %v1646, %v1649
    %v1651 = vsel %vm1640, nan, %v1650
    %v1652 = vand.u32 2147483647, %v170
    %vm1653 = vcmp.le.f32.partialorder %v1652, 0.7853982
    %vm1654 = vcmp.lt.s32.totalorder %v170, 0
    %v1655 = vand.u32 %v170, 2139095040
    %v1656 = vshrl.u32 %v1655, 23
    %v1657 = vsub.s32 %v1656, 127
    %v1658 = vand.u32 2147483647, %v170
    %v1659 = vand.u32 %v1658, 8388607
    %v1660 = vor.u32 %v1659, 8388608
    %v1661 = vsub.s32 0, %v1660
    %v1662 = vadd.s32 %v1657, 1
    %vm1663 = vcmp.gt.s32.totalorder %v1662, 0
    %v1664 = vsel %vm1663, %v1662, 0
    %v1665 = vshrl.u32 %v1664, 5
    %v1666 = vand.u32 %v1664, 31
    %v1667 = vsub.s32 32, %v1666
    %v1668 = vshrl.u32 683565275, %v1667
    %v1669 = vshll.u32 683565275, %v1666
    %v1670 = vshrl.u32 2475754826, %v1667
    %v1671 = vor.u32 %v1669, %v1670
    %v1672 = vshll.u32 2475754826, %v1666
    %v1673 = vshrl.u32 2131351028, %v1667
    %v1674 = vor.u32 %v1672, %v1673
    %v1675 = vshll.u32 2131351028, %v1666
    %v1676 = vshrl.u32 2102212464, %v1667
    %v1677 = vor.u32 %v1675, %v1676
    %v1678 = vshll.u32 2102212464, %v1666
    %v1679 = vshrl.u32 920167782, %v1667
    %v1680 = vor.u32 %v1678, %v1679
    %v1681 = vshll.u32 920167782, %v1666
    %v1682 = vshrl.u32 1326507024, %v1667
    %v1683 = vor.u32 %v1681, %v1682
    %vm1684 = vcmp.lt.s32.totalorder %v1665, 1
    %vm1685 = vcmp.lt.s32.totalorder %v1665, 2
    %vm1686 = vcmp.lt.s32.totalorder %v1665, 3
    %vm1687 = vcmp.lt.s32.totalorder %v1665, 4
    %v1688 = vsel %vm1684, %v1668, %v1671
    %v1689 = vsel %vm1687, %v1677, 2102212464
    %v1690 = vsel %vm1686, %v1674, %v1689
    %v1691 = vsel %vm1685, %v1688, %v1690
    %v1692 = vsel %vm1684, %v1671, %v1674
    %v1693 = vsel %vm1687, %v1680, 920167782
    %v1694 = vsel %vm1686, %v1677, %v1693
    %v1695 = vsel %vm1685, %v1692, %v1694
    %v1696 = vsel %vm1684, %v1674, %v1677
    %v1697 = vsel %vm1687, %v1683, 1326507024
    %v1698 = vsel %vm1686, %v1680, %v1697
    %v1699 = vsel %vm1685, %v1696, %v1698
    %v1700 = vshll.u32 %v1660, 8
    %v1701 = vmul.u32.u64.compose %v1700, %v1699
    %v1702 = vextract.low.u32 %v1701
    %v1703 = vextract.high.u32 %v1701
    %v1704 = vmul.u32.u64.compose %v1700, %v1695
    %v1705 = vextract.low.u32 %v1704
    %v1706 = vextract.high.u32 %v1704
    %v1707 = vmul.u32 %v1700, %v1691
    %v1708 = vadd.s32 %v1703, %v1705
    %vm1709 = vc.u32 %v1703, %v1705
    %v1710 = vadd.s32 %v1706, 1
    %v1711 = vsel %vm1709, %v1710, %v1706
    %v1712 = vadd.s32 %v1707, %v1711
    %v1713 = vadd.s32 %v1712, 536870912
    %v1714 = vshrl.u32 %v1713, 30
    %v1715 = vshll.u32 %v1714, 30
    %v1716 = vsub.s32 %v1712, %v1715
    %vm1717 = vcmp.lt.s32.totalorder %v1716, 0
    %v1718 = vsub.s32 0, %v1716
    %v1719 = vsel %vm1717, %v1718, %v1716
    %v1720 = vclz %v1719
    %v1721 = vsub.s32 %v1720, 2
    %vm1722 = vcmp.gt.s32.totalorder 0, %v1721
    %v1723 = vsel %vm1722, 0, %v1721
    %v1724 = vsub.s32 32, %v1723
    %v1725 = vshll.u32 %v1716, %v1723
    %v1726 = vshrl.u32 %v1708, %v1724
    %v1727 = vor.u32 %v1725, %v1726
    %v1728 = vsub.s32 4294967266, %v1723
    %v1729 = vadd.s32 %v1728, 127
    %v1730 = vshll.u32 %v1729, 23
    %v1731 = vor.u32 4788187, %v1730
    %v1732 = vand.u32 2147483647, %v1731
    %v1734 = vcvt.s32.f32 %v1727
    %v1735 = vmul.f32 %v1734, %v1732
    %v1736 = vxor.u32 %v1735, 2147483648
    %v1737 = vsel %vm1654, %v1736, %v1735
    %v1738 = vsub.s32 4, %v1714
    %v1739 = vsel %vm1654, %v1738, %v1714
    %v1740 = vsel %vm1653, %v170, %v1737
    %v1741 = vsel %vm1653, 0, %v1739
    %v1742 = vcosq.f32.pop %v1740
    %v1743 = vsinq.f32.pop %v1740
    %vm1744 = vweird.f32 %v170
    %v1745 = vadd.s32 %v1741, 3
    %v1746 = vand.u32 %v1745, 3
    %vm1747 = vcmp.lt.s32.totalorder %v1746, 2
    %vm1748 = vcmp.eq.s32.totalorder %v1746, 0
    %v1749 = vxor.u32 %v1743, 2147483648
    %v1750 = vsel %vm1748, %v1742, %v1749
    %vm1751 = vcmp.eq.s32.totalorder %v1746, 2
    %v1752 = vxor.u32 %v1742, 2147483648
    %v1753 = vsel %vm1751, %v1752, %v1743
    %v1754 = vsel %vm1747, %v1750, %v1753
    %v1755 = vsel %vm1744, nan, %v1754
    %v1756 = vand.u32 2147483647, %v171
    %vm1757 = vcmp.le.f32.partialorder %v1756, 0.7853982
    %vm1758 = vcmp.lt.s32.totalorder %v171, 0
    %v1759 = vand.u32 %v171, 2139095040
    %v1760 = vshrl.u32 %v1759, 23
    %v1761 = vsub.s32 %v1760, 127
    %v1762 = vand.u32 2147483647, %v171
    %v1763 = vand.u32 %v1762, 8388607
    %v1764 = vor.u32 %v1763, 8388608
    %v1765 = vsub.s32 0, %v1764
    %v1766 = vadd.s32 %v1761, 1
    %vm1767 = vcmp.gt.s32.totalorder %v1766, 0
    %v1768 = vsel %vm1767, %v1766, 0
    %v1769 = vshrl.u32 %v1768, 5
    %v1770 = vand.u32 %v1768, 31
    %v1771 = vsub.s32 32, %v1770
    %v1772 = vshrl.u32 683565275, %v1771
    %v1773 = vshll.u32 683565275, %v1770
    %v1774 = vshrl.u32 2475754826, %v1771
    %v1775 = vor.u32 %v1773, %v1774
    %v1776 = vshll.u32 2475754826, %v1770
    %v1777 = vshrl.u32 2131351028, %v1771
    %v1778 = vor.u32 %v1776, %v1777
    %v1779 = vshll.u32 2131351028, %v1770
    %v1780 = vshrl.u32 2102212464, %v1771
    %v1781 = vor.u32 %v1779, %v1780
    %v1782 = vshll.u32 2102212464, %v1770
    %v1783 = vshrl.u32 920167782, %v1771
    %v1784 = vor.u32 %v1782, %v1783
    %v1785 = vshll.u32 920167782, %v1770
    %v1786 = vshrl.u32 1326507024, %v1771
    %v1787 = vor.u32 %v1785, %v1786
    %vm1788 = vcmp.lt.s32.totalorder %v1769, 1
    %vm1789 = vcmp.lt.s32.totalorder %v1769, 2
    %vm1790 = vcmp.lt.s32.totalorder %v1769, 3
    %vm1791 = vcmp.lt.s32.totalorder %v1769, 4
    %v1792 = vsel %vm1788, %v1772, %v1775
    %v1793 = vsel %vm1791, %v1781, 2102212464
    %v1794 = vsel %vm1790, %v1778, %v1793
    %v1795 = vsel %vm1789, %v1792, %v1794
    %v1796 = vsel %vm1788, %v1775, %v1778
    %v1797 = vsel %vm1791, %v1784, 920167782
    %v1798 = vsel %vm1790, %v1781, %v1797
    %v1799 = vsel %vm1789, %v1796, %v1798
    %v1800 = vsel %vm1788, %v1778, %v1781
    %v1801 = vsel %vm1791, %v1787, 1326507024
    %v1802 = vsel %vm1790, %v1784, %v1801
    %v1803 = vsel %vm1789, %v1800, %v1802
    %v1804 = vshll.u32 %v1764, 8
    %v1805 = vmul.u32.u64.compose %v1804, %v1803
    %v1806 = vextract.low.u32 %v1805
    %v1807 = vextract.high.u32 %v1805
    %v1808 = vmul.u32.u64.compose %v1804, %v1799
    %v1809 = vextract.low.u32 %v1808
    %v1810 = vextract.high.u32 %v1808
    %v1811 = vmul.u32 %v1804, %v1795
    %v1812 = vadd.s32 %v1807, %v1809
    %vm1813 = vc.u32 %v1807, %v1809
    %v1814 = vadd.s32 %v1810, 1
    %v1815 = vsel %vm1813, %v1814, %v1810
    %v1816 = vadd.s32 %v1811, %v1815
    %v1817 = vadd.s32 %v1816, 536870912
    %v1818 = vshrl.u32 %v1817, 30
    %v1819 = vshll.u32 %v1818, 30
    %v1820 = vsub.s32 %v1816, %v1819
    %vm1821 = vcmp.lt.s32.totalorder %v1820, 0
    %v1822 = vsub.s32 0, %v1820
    %v1823 = vsel %vm1821, %v1822, %v1820
    %v1824 = vclz %v1823
    %v1825 = vsub.s32 %v1824, 2
    %vm1826 = vcmp.gt.s32.totalorder 0, %v1825
    %v1827 = vsel %vm1826, 0, %v1825
    %v1828 = vsub.s32 32, %v1827
    %v1829 = vshll.u32 %v1820, %v1827
    %v1830 = vshrl.u32 %v1812, %v1828
    %v1831 = vor.u32 %v1829, %v1830
    %v1832 = vsub.s32 4294967266, %v1827
    %v1833 = vadd.s32 %v1832, 127
    %v1834 = vshll.u32 %v1833, 23
    %v1835 = vor.u32 4788187, %v1834
    %v1836 = vand.u32 2147483647, %v1835
    %v1838 = vcvt.s32.f32 %v1831
    %v1839 = vmul.f32 %v1838, %v1836
    %v1840 = vxor.u32 %v1839, 2147483648
    %v1841 = vsel %vm1758, %v1840, %v1839
    %v1842 = vsub.s32 4, %v1818
    %v1843 = vsel %vm1758, %v1842, %v1818
    %v1844 = vsel %vm1757, %v171, %v1841
    %v1845 = vsel %vm1757, 0, %v1843
    %v1846 = vcosq.f32.pop %v1844
    %v1847 = vsinq.f32.pop %v1844
    %vm1848 = vweird.f32 %v171
    %v1849 = vadd.s32 %v1845, 3
    %v1850 = vand.u32 %v1849, 3
    %vm1851 = vcmp.lt.s32.totalorder %v1850, 2
    %vm1852 = vcmp.eq.s32.totalorder %v1850, 0
    %v1853 = vxor.u32 %v1847, 2147483648
    %v1854 = vsel %vm1852, %v1846, %v1853
    %vm1855 = vcmp.eq.s32.totalorder %v1850, 2
    %v1856 = vxor.u32 %v1846, 2147483648
    %v1857 = vsel %vm1855, %v1856, %v1847
    %v1858 = vsel %vm1851, %v1854, %v1857
    %v1859 = vsel %vm1848, nan, %v1858
    %v1868 = vrot.slane %v1131, 4
    %v1869 = vrot.slane %v1235, 4
    %v1870 = vrot.slane %v1339, 4
    %v1871 = vrot.slane %v1443, 4
    %v1872 = vrot.slane %v1547, 4
    %v1873 = vrot.slane %v1651, 4
    %v1874 = vrot.slane %v1755, 4
    %v1875 = vrot.slane %v1859, 4
    %v1884 = vmul.f32 %v114, %v1868
    %v1885 = vmul.f32 %v121, %v1869
    %v1886 = vmul.f32 %v128, %v1870
    %v1887 = vmul.f32 %v135, %v1871
    %v1888 = vmul.f32 %v142, %v1872
    %v1889 = vmul.f32 %v149, %v1873
    %v1890 = vmul.f32 %v156, %v1874
    %v1891 = vmul.f32 %v163, %v1875
    %v1900 = vrot.slane %v1884, 4
    %v1901 = vrot.slane %v1885, 4
    %v1902 = vrot.slane %v1886, 4
    %v1903 = vrot.slane %v1887, 4
    %v1904 = vrot.slane %v1888, 4
    %v1905 = vrot.slane %v1889, 4
    %v1906 = vrot.slane %v1890, 4
    %v1907 = vrot.slane %v1891, 4
    %vm1916 = vcmask 1043456
    %v1917 = vsel %vm1916, %v1020, %v1900
    %v1918 = vsel %vm1916, %v1021, %v1901
    %v1919 = vsel %vm1916, %v1022, %v1902
    %v1920 = vsel %vm1916, %v1023, %v1903
    %v1921 = vsel %vm1916, %v1024, %v1904
    %v1922 = vsel %vm1916, %v1025, %v1905
    %v1923 = vsel %vm1916, %v1026, %v1906
    %v1924 = vsel %vm1916, %v1027, %v1907
    %v1925 = vld [vmem:[#allocation2] sm:$0xff]
    %v1926 = vld [vmem:[#allocation2 + $0x8] sm:$0xff]
    %v1927 = vld [vmem:[#allocation2 + $0x10] sm:$0xff]
    %v1928 = vld [vmem:[#allocation2 + $0x18] sm:$0xff]
    %v1929 = vld [vmem:[#allocation2 + $0x20] sm:$0xff]
    %v1930 = vld [vmem:[#allocation2 + $0x28] sm:$0xff]
    %v1931 = vld [vmem:[#allocation2 + $0x30] sm:$0xff]
    %v1932 = vld [vmem:[#allocation2 + $0x38] sm:$0xff]
    %v1933 = vmul.f32 %v1917, 0.05
    %v1934 = vmul.f32 %v1918, 0.05
    %v1935 = vmul.f32 %v1919, 0.05
    %v1936 = vmul.f32 %v1920, 0.05
    %v1937 = vmul.f32 %v1921, 0.05
    %v1938 = vmul.f32 %v1922, 0.05
    %v1939 = vmul.f32 %v1923, 0.05
    %v1940 = vmul.f32 %v1924, 0.05
    %v1941 = vadd.f32 %v1925, %v1933
    %v1942 = vadd.f32 %v1926, %v1934
    %v1943 = vadd.f32 %v1927, %v1935
    %v1944 = vadd.f32 %v1928, %v1936
    %v1945 = vadd.f32 %v1929, %v1937
    %v1946 = vadd.f32 %v1930, %v1938
    %v1947 = vadd.f32 %v1931, %v1939
    %v1948 = vadd.f32 %v1932, %v1940
    %v1949 = vadd.f32 %v1941, 0.0
    %v1950 = vadd.f32 %v1942, 0.0
    %v1951 = vadd.f32 %v1943, 0.0
    %v1952 = vadd.f32 %v1944, 0.0
    %v1953 = vadd.f32 %v1945, 0.0
    %v1954 = vadd.f32 %v1946, 0.0
    %v1955 = vadd.f32 %v1947, 0.0
    %v1956 = vadd.f32 %v1948, 0.0
    %1957 = vst [vmem:[#allocation7] sm:$0xff] %v1949
    %1958 = vst [vmem:[#allocation7 + $0x8] sm:$0xff] %v1950
    %1959 = vst [vmem:[#allocation7 + $0x10] sm:$0xff] %v1951
    %1960 = vst [vmem:[#allocation7 + $0x18] sm:$0xff] %v1952
    %1961 = vst [vmem:[#allocation7 + $0x20] sm:$0xff] %v1953
    %1962 = vst [vmem:[#allocation7 + $0x28] sm:$0xff] %v1954
    %1963 = vst [vmem:[#allocation7 + $0x30] sm:$0xff] %v1955
    %1964 = vst [vmem:[#allocation7 + $0x38] sm:$0xff] %v1956
    // Predicated region
    $region18: #{tpu_custom_call.1} parent=1 // pred_check
      _
    $region19: #{tpu_custom_call.1} parent=1 // pred_check_branch
      %1966 = sbr.rel (0) target = $region21
    $region20: #{tpu_custom_call.1} parent=1 // pred_region
      %s1968 = ssub.s32 1024, 1024
      %1969 = vsyncadd [#allocation4], %s1968
      %s1971 = sshll.u32 [#allocation7], 4
      %s1972 = int_to_ptr.vmem [resolvable:$true] %s1971
      %1974 = dma.vmem_to_hbm [thread:$0]  %s1972, 1024, %s2, [#allocation4]
    $region21: #{tpu_custom_call.1} parent=1 // pred_fallthru
      _
    // Predicated region
    $region22: #{tpu_custom_call.1} parent=1 // pred_check
      _
    $region23: #{tpu_custom_call.1} parent=1 // pred_check_branch
      %1976 = sbr.rel (0) target = $region25
    $region24: #{tpu_custom_call.1} parent=1 // pred_region
      %1977 = dma.done [#allocation4], 1024
    $region25: #{tpu_custom_call.1} parent=1 // pred_fallthru
      _
    %1978 = vsyncpa [#allocation3], 1
    %1979 = vsyncpa [#allocation6], 1
    %1980 = vsyncpa [#allocation4], 1

</llo_original>
